<compile_context>
chip_gen: v6e
topology: v6e:2x2x1
jax: 0.10.0
libtpu: 0.0.40
codegen_flags: <defaults>
</compile_context>

<pallas_src>
import functools
import math

import jax
import jax.numpy as jnp
from jax.experimental import pallas as pl
from jax.experimental.pallas import tpu as pltpu


# ----------------------------- Pallas kernel ------------------------------- #
def _fused_layers_kernel(x_ref, w_ref, init_c_ref, init_h_ref,
                         att_flat_ref, att_ref,
                         w_comb_ref, b_comb_ref, wa2a_ref, ba2a_ref,
                         wd2d_ref, bd2d_ref, wr2a_ref,
                         out_ref, h_carry_ref, *, word_input_layer):
    B, A, R = att_ref.shape
    l = pl.program_id(0)

    @pl.when(l == 0)
    def _init_carry():
        h_carry_ref[...] = jnp.zeros_like(h_carry_ref)

    carry = h_carry_ref[...]                                  # h output of layer l-1
    # xt chain: layer 0 -> x ; word-input layer -> w + h_{l-1} ; else -> h_{l-1}
    xt = jnp.where(l == 0, x_ref[...],
                   jnp.where(l == word_input_layer, w_ref[...] + carry, carry))

    prev_c = init_c_ref[0]                                    # (B, R) recurrent state
    prev_h = init_h_ref[0]                                    # (B, R)

    # --- fused [i2h | h2h | h2a] projection: one MXU push (K=2R, N=4R+A) ---
    xh = jnp.concatenate([xt, prev_h], axis=-1)               # (B, 2R)
    comb = jnp.dot(xh, w_comb_ref[0],
                   preferred_element_type=jnp.float32) + b_comb_ref[0]   # (B, 4R+A)
    gate_part = comb[:, :4 * R]        # i2h(xt)+h2h(prev_h) + presummed bias (incl. br2a)
    att_h = comb[:, 4 * R:]            # h2a(prev_h) for the attention          (B, A)

    # --- soft attention ---
    att_v = jnp.dot(att_flat_ref[...], wa2a_ref[0],
                    preferred_element_type=jnp.float32) + ba2a_ref[0]    # (B*A, A)
    att_v = att_v.reshape(B, A, A)     # small, unavoidable in-kernel regroup of an intermediate
    dot = jnp.tanh(att_v + att_h[:, :, None])                            # (B, A, A)
    scores = jnp.sum(dot * wd2d_ref[0], axis=-1) + bd2d_ref[0]           # (B, A)
    # softmax over A; max-subtraction dropped: tanh bounds |scores| <= A*max|wd2d|+|bd2d|
    e = jnp.exp(scores)
    weight = e * pl.reciprocal(jnp.sum(e, axis=-1, keepdims=True), approx=True)
    att_res = jnp.sum(att_ref[...] * weight[:, :, None], axis=1)         # (B, R)

    # --- lstm_core_with_att cell: gates = i2h(xt) + h2h(prev_h) + a2h(att_res) ---
    gates = gate_part + jnp.dot(att_res, wr2a_ref[0],
                                preferred_element_type=jnp.float32)      # (B, 4R)
    sig = jax.nn.sigmoid(gates[:, :3 * R])
    in_gate = sig[:, :R]
    forget_gate = sig[:, R:2 * R]
    out_gate = sig[:, 2 * R:3 * R]
    in_transform = jnp.tanh(gates[:, 3 * R:])
    next_c = forget_gate * prev_c + in_gate * in_transform
    next_h = out_gate * jnp.tanh(next_c)
    # TODO(synk): train-mode F.dropout(next_h, p) is skipped (p = 0 / eval mode).

    h_carry_ref[...] = next_h                                 # carry to next layer's xt
    out_ref[...] = jnp.concatenate([next_c, next_h], axis=-1)  # lane-dense (B, 2R) block


# ------------------------------ wrapper ------------------------------------ #
def pack_params(params, att_size):
    """Stack per-layer params with a leading L axis and fuse i2h/h2h/h2a weights."""
    w_comb, b_comb, wa2a, ba2a, wd2d, bd2d, wr2a = [], [], [], [], [], [], []
    for p in params:
        in_size = p["wi2h"].shape[0]
        top = jnp.concatenate(
            [p["wi2h"], jnp.zeros((in_size, att_size), jnp.float32)], axis=-1)
        bot = jnp.concatenate([p["wh2h"], p["wh2a"]], axis=-1)
        w_comb.append(jnp.concatenate([top, bot], axis=0))          # (2R, 4R+A)
        b_comb.append(jnp.concatenate(
            [p["bi2h"] + p["bh2h"] + p["br2a"], p["bh2a"]], axis=-1))  # (1, 4R+A)
        wa2a.append(p["wa2a"]); ba2a.append(p["ba2a"])
        wd2d.append(p["wd2d"]); bd2d.append(p["bd2d"])
        wr2a.append(p["wr2a"])
    stk = lambda xs: jnp.stack(xs, axis=0)
    return dict(w_comb=stk(w_comb), b_comb=stk(b_comb), wa2a=stk(wa2a),
                ba2a=stk(ba2a), wd2d=stk(wd2d), bd2d=stk(bd2d), wr2a=stk(wr2a))


def lstm_soft_att_forward(x, w, att, inputs, params, num_layers, word_input_layer):
    B, A, R = att.shape
    L = num_layers
    packed = pack_params(params, A)
    init_c = jnp.stack([inputs[2 * i] for i in range(L)], axis=0)       # (L, B, R)
    init_h = jnp.stack([inputs[2 * i + 1] for i in range(L)], axis=0)   # (L, B, R)
    att_flat = att.reshape(B * A, R)    # wrapper-side reshape (free; avoids in-kernel relayout)

    def resident(shape):      # same block every layer -> stays in VMEM, no re-DMA
        return pl.BlockSpec(shape, lambda l, _n=len(shape): (0,) * _n)

    def per_layer(shape):     # stacked on a leading L axis, indexed by the grid
        return pl.BlockSpec((1,) + shape, lambda l, _n=len(shape): (l,) + (0,) * _n)

    in_specs = [
        resident((B, R)),                 # x
        resident((B, R)),                 # w
        per_layer((B, R)),                # init_c  (L, B, R)
        per_layer((B, R)),                # init_h  (L, B, R)
        resident((B * A, R)),             # att_flat
        resident((B, A, R)),              # att
        per_layer((2 * R, 4 * R + A)),    # w_comb
        per_layer((1, 4 * R + A)),        # b_comb
        per_layer((R, A)),                # wa2a
        per_layer((1, A)),                # ba2a
        per_layer((1, A)),                # wd2d (row form of Linear(A, 1))
        per_layer((1, 1)),                # bd2d
        per_layer((R, 4 * R)),            # wr2a
    ]
    # Lane-dense output slab: (B, L*2R); each grid step writes its (B, 2R) block.
    out_spec = pl.BlockSpec((B, 2 * R), lambda l: (0, l))

    out = pl.pallas_call(
        functools.partial(_fused_layers_kernel, word_input_layer=word_input_layer),
        grid=(L,),
        in_specs=in_specs,
        out_specs=out_spec,
        out_shape=jax.ShapeDtypeStruct((B, L * 2 * R), jnp.float32),
        scratch_shapes=[pltpu.VMEM((B, R), jnp.float32)],   # layer-to-layer h carry
        compiler_params=pltpu.CompilerParams(dimension_semantics=("arbitrary",)),
    )(x, w, init_c, init_h, att_flat, att,
      packed["w_comb"], packed["b_comb"], packed["wa2a"], packed["ba2a"],
      packed["wd2d"], packed["bd2d"], packed["wr2a"])

    outputs = []
    for i in range(L):
        base = i * 2 * R
        outputs.append(out[:, base:base + R])            # next_c of layer i
        outputs.append(out[:, base + R:base + 2 * R])    # next_h of layer i
    return outputs


# ------------------------- pure-JAX reference ------------------------------ #
def _reference_forward(x, w, att, inputs, params, num_layers, word_input_layer):
    B, A, R = att.shape
    outputs = []
    for i in range(num_layers):
        p = params[i]
        prev_c = inputs[2 * i]
        prev_h = inputs[2 * i + 1]
        if i == 0:
            xt = x
        elif i == word_input_layer:
            xt = w + outputs[-1]
        else:
            xt = outputs[-1]
        att_v = (att.reshape(B * A, R) @ p["wa2a"] + p["ba2a"]).reshape(B, A, A)
        att_h = prev_h @ p["wh2a"] + p["bh2a"]
        dot = jnp.tanh(att_v + att_h[:, :, None])
        scores = jnp.sum(dot * p["wd2d"], axis=-1) + p["bd2d"]
        weight = jax.nn.softmax(scores, axis=-1)
        att_res = jnp.einsum("bar,ba->br", att, weight)
        all_sums = (xt @ p["wi2h"] + p["bi2h"]
                    + prev_h @ p["wh2h"] + p["bh2h"]
                    + att_res @ p["wr2a"] + p["br2a"])
        sig = jax.nn.sigmoid(all_sums[:, :3 * R])
        next_c = sig[:, R:2 * R] * prev_c + sig[:, :R] * jnp.tanh(all_sums[:, 3 * R:])
        next_h = sig[:, 2 * R:3 * R] * jnp.tanh(next_c)
        outputs += [next_c, next_h]
    return outputs


# --------------------------- parameter init -------------------------------- #
def _linear_params(key, fan_in, fan_out):
    kw, kb = jax.random.split(key)
    std = math.sqrt(2.0 / (fan_in + fan_out))                 # xavier_normal (gain=1)
    w_ = std * jax.random.normal(kw, (fan_in, fan_out), jnp.float32)
    bound = 1.0 / math.sqrt(fan_in)                           # PyTorch default bias init
    b = jax.random.uniform(kb, (1, fan_out), jnp.float32, -bound, bound)
    return w_, b


def init_params(key, input_size, rnn_size, att_size, num_layers):
    assert input_size == rnn_size, "combined weight layout assumes input_size == rnn_size"
    params = []
    for _ in range(num_layers):
        keys = jax.random.split(key, 7)
        key = keys[0]
        wa2a, ba2a = _linear_params(keys[1], rnn_size, att_size)
        wh2a, bh2a = _linear_params(keys[2], rnn_size, att_size)
        wd2d, bd2d = _linear_params(keys[3], att_size, 1)      # (A,1), (1,1)
        wi2h, bi2h = _linear_params(keys[4], input_size, 4 * rnn_size)
        wh2h, bh2h = _linear_params(keys[5], rnn_size, 4 * rnn_size)
        wr2a, br2a = _linear_params(keys[6], rnn_size, 4 * rnn_size)
        params.append(dict(
            wa2a=wa2a, ba2a=ba2a, wh2a=wh2a, bh2a=bh2a,
            wd2d=wd2d.T,            # (1, A) row, applied as a lane-reduction
            bd2d=bd2d,              # (1, 1)
            wi2h=wi2h, bi2h=bi2h, wh2h=wh2h, bh2h=bh2h, wr2a=wr2a, br2a=br2a))
    return params


# --------------------------------- main ------------------------------------ #
if __name__ == "__main__":
    B = 4
    rnn_size = 64            # 2*R = 128 -> lane-dense per-layer output block
    input_size = rnn_size    # required by the module for layers > 0
    att_size = 16
    num_layers = 2
    word_input_layer = 1

    key = jax.random.PRNGKey(0)
    kp, kx, kw, ka, ks = jax.random.split(key, 5)

    params = init_params(kp, input_size, rnn_size, att_size, num_layers)

    x = jax.random.normal(kx, (B, input_size), jnp.float32)
    w = jax.random.normal(kw, (B, rnn_size), jnp.float32)
    att = jax.random.normal(ka, (B, att_size, rnn_size), jnp.float32)
    state_keys = jax.random.split(ks, 2 * num_layers)
    inputs = [jax.random.normal(state_keys[i], (B, rnn_size), jnp.float32)
              for i in range(2 * num_layers)]

    outs = lstm_soft_att_forward(x, w, att, inputs, params,
                                 num_layers, word_input_layer)
    outs = [jax.block_until_ready(o) for o in outs]

    refs = _reference_forward(x, w, att, inputs, params,
                              num_layers, word_input_layer)
    # Tolerance is 1e-2 because the kernel's softmax uses the EUP approximate
    # reciprocal (pl.reciprocal(..., approx=True)); everything else is exact f32.
    for o, r in zip(outs, refs):
        assert o.shape == r.shape and o.dtype == jnp.float32
        assert jnp.allclose(o, r, atol=1e-2, rtol=1e-2), "mismatch vs reference"

    print("KERNEL_OK")
</pallas_src>

<mosaic_0001>
module attributes {stable_mosaic.version = 11 : i64} {
  func.func @_fused_layers_kernel(%arg0: i32, %arg1: memref<4x64xf32, #tpu.memory_space<vmem>>, %arg2: memref<4x64xf32, #tpu.memory_space<vmem>>, %arg3: memref<1x4x64xf32, #tpu.memory_space<vmem>>, %arg4: memref<1x4x64xf32, #tpu.memory_space<vmem>>, %arg5: memref<64x64xf32, #tpu.memory_space<vmem>>, %arg6: memref<4x16x64xf32, #tpu.memory_space<vmem>>, %arg7: memref<1x128x272xf32, #tpu.memory_space<vmem>>, %arg8: memref<1x1x272xf32, #tpu.memory_space<vmem>>, %arg9: memref<1x64x16xf32, #tpu.memory_space<vmem>>, %arg10: memref<1x1x16xf32, #tpu.memory_space<vmem>>, %arg11: memref<1x1x16xf32, #tpu.memory_space<vmem>>, %arg12: memref<1x1x1xf32, #tpu.memory_space<vmem>>, %arg13: memref<1x64x256xf32, #tpu.memory_space<vmem>>, %arg14: memref<4x128xf32, #tpu.memory_space<vmem>>, %arg15: memref<4x64xf32, #tpu.memory_space<vmem>>) attributes {dimension_semantics = [#tpu.dimension_semantics<arbitrary>], iteration_bounds = array<i64: 2>, scalar_prefetch = 0 : i64, scratch_operands = 1 : i64, tpu.core_type = #tpu.core_type<tc>, window_params = [{pipeline_mode = #tpu.pipeline_mode<synchronous>, transform_indices = @transform_0, window_bounds = array<i64: 4, 64>}, {pipeline_mode = #tpu.pipeline_mode<synchronous>, transform_indices = @transform_1, window_bounds = array<i64: 4, 64>}, {transform_indices = @transform_2, window_bounds = array<i64: 1, 4, 64>}, {transform_indices = @transform_3, window_bounds = array<i64: 1, 4, 64>}, {pipeline_mode = #tpu.pipeline_mode<synchronous>, transform_indices = @transform_4, window_bounds = array<i64: 64, 64>}, {pipeline_mode = #tpu.pipeline_mode<synchronous>, transform_indices = @transform_5, window_bounds = array<i64: 4, 16, 64>}, {transform_indices = @transform_6, window_bounds = array<i64: 1, 128, 272>}, {transform_indices = @transform_7, window_bounds = array<i64: 1, 1, 272>}, {transform_indices = @transform_8, window_bounds = array<i64: 1, 64, 16>}, {transform_indices = @transform_9, window_bounds = array<i64: 1, 1, 16>}, {transform_indices = @transform_10, window_bounds = array<i64: 1, 1, 16>}, {transform_indices = @transform_11, window_bounds = array<i64: 1, 1, 1>}, {transform_indices = @transform_12, window_bounds = array<i64: 1, 64, 256>}, {transform_indices = @transform_13, window_bounds = array<i64: 4, 128>}]} {
    %c0_i32 = arith.constant 0 : i32
    %0 = arith.cmpi eq, %arg0, %c0_i32 : i32
    %1 = arith.extui %0 : i1 to i32
    %c0_i32_0 = arith.constant 0 : i32
    %2 = arith.cmpi ne, %1, %c0_i32_0 : i32
    scf.if %2 {
      %cst_49 = arith.constant 0.000000e+00 : f32
      %82 = vector.broadcast %cst_49 : f32 to vector<4x64xf32>
      %c0_50 = arith.constant 0 : index
      %c0_51 = arith.constant 0 : index
      %83 = vector.load %arg15[%c0_50, %c0_51] : memref<4x64xf32, #tpu.memory_space<vmem>>, vector<4x64xf32>
      tpu.vector_store %arg15[%c0_50, %c0_51], %82 {strides = array<i32>} : memref<4x64xf32, #tpu.memory_space<vmem>>, vector<4x64xf32>,
    } else {
    }
    %c0 = arith.constant 0 : index
    %c0_1 = arith.constant 0 : index
    %3 = vector.load %arg15[%c0, %c0_1] : memref<4x64xf32, #tpu.memory_space<vmem>>, vector<4x64xf32>
    %c0_i32_2 = arith.constant 0 : i32
    %4 = arith.cmpi eq, %arg0, %c0_i32_2 : i32
    %c0_3 = arith.constant 0 : index
    %c0_4 = arith.constant 0 : index
    %5 = vector.load %arg1[%c0_3, %c0_4] : memref<4x64xf32, #tpu.memory_space<vmem>>, vector<4x64xf32>
    %c1_i32 = arith.constant 1 : i32
    %6 = arith.cmpi eq, %arg0, %c1_i32 : i32
    %c0_5 = arith.constant 0 : index
    %c0_6 = arith.constant 0 : index
    %7 = vector.load %arg2[%c0_5, %c0_6] : memref<4x64xf32, #tpu.memory_space<vmem>>, vector<4x64xf32>
    %8 = arith.addf %7, %3 : vector<4x64xf32>
    %9 = arith.select %6, %8, %3 : vector<4x64xf32>
    %10 = arith.select %4, %5, %9 : vector<4x64xf32>
    %c0_7 = arith.constant 0 : index
    %c0_8 = arith.constant 0 : index
    %c0_9 = arith.constant 0 : index
    %11 = vector.load %arg3[%c0_7, %c0_8, %c0_9] : memref<1x4x64xf32, #tpu.memory_space<vmem>>, vector<1x4x64xf32>
    %12 = vector.shape_cast %11 : vector<1x4x64xf32> to vector<4x64xf32>
    %c0_10 = arith.constant 0 : index
    %c0_11 = arith.constant 0 : index
    %c0_12 = arith.constant 0 : index
    %13 = vector.load %arg4[%c0_10, %c0_11, %c0_12] : memref<1x4x64xf32, #tpu.memory_space<vmem>>, vector<1x4x64xf32>
    %14 = vector.shape_cast %13 : vector<1x4x64xf32> to vector<4x64xf32>
    %15 = tpu.concatenate %10, %14 in 1 : vector<4x64xf32>, vector<4x64xf32> -> vector<4x128xf32>
    %c0_13 = arith.constant 0 : index
    %c0_14 = arith.constant 0 : index
    %c0_15 = arith.constant 0 : index
    %16 = vector.load %arg7[%c0_13, %c0_14, %c0_15] : memref<1x128x272xf32, #tpu.memory_space<vmem>>, vector<1x128x272xf32>
    %17 = vector.shape_cast %16 : vector<1x128x272xf32> to vector<128x272xf32>
    %cst = arith.constant dense<0.000000e+00> : vector<4x272xf32>
    %18 = tpu.matmul %15, %17, %cst {dimension_numbers = #tpu.dot_dimension_numbers<[1], [0], [0], [1], [0, 0, 1, 1], [], []>} : vector<4x128xf32>, vector<128x272xf32>, vector<4x272xf32> -> vector<4x272xf32>
    %c0_16 = arith.constant 0 : index
    %c0_17 = arith.constant 0 : index
    %c0_18 = arith.constant 0 : index
    %19 = vector.load %arg8[%c0_16, %c0_17, %c0_18] : memref<1x1x272xf32, #tpu.memory_space<vmem>>, vector<1x1x272xf32>
    %20 = vector.shape_cast %19 : vector<1x1x272xf32> to vector<1x272xf32>
    %21 = vector.broadcast %20 : vector<1x272xf32> to vector<4x272xf32>
    %22 = arith.addf %18, %21 : vector<4x272xf32>
    %23 = vector.extract_strided_slice %22 {offsets = [0, 0], sizes = [4, 256], strides = [1, 1]} : vector<4x272xf32> to vector<4x256xf32>
    %24 = vector.extract_strided_slice %22 {offsets = [0, 256], sizes = [4, 16], strides = [1, 1]} : vector<4x272xf32> to vector<4x16xf32>
    %c0_19 = arith.constant 0 : index
    %c0_20 = arith.constant 0 : index
    %25 = vector.load %arg5[%c0_19, %c0_20] : memref<64x64xf32, #tpu.memory_space<vmem>>, vector<64x64xf32>
    %c0_21 = arith.constant 0 : index
    %c0_22 = arith.constant 0 : index
    %c0_23 = arith.constant 0 : index
    %26 = vector.load %arg9[%c0_21, %c0_22, %c0_23] : memref<1x64x16xf32, #tpu.memory_space<vmem>>, vector<1x64x16xf32>
    %27 = vector.shape_cast %26 : vector<1x64x16xf32> to vector<64x16xf32>
    %cst_24 = arith.constant dense<0.000000e+00> : vector<64x16xf32>
    %28 = tpu.matmul %25, %27, %cst_24 {dimension_numbers = #tpu.dot_dimension_numbers<[1], [0], [0], [1], [0, 0, 1, 1], [], []>} : vector<64x64xf32>, vector<64x16xf32>, vector<64x16xf32> -> vector<64x16xf32>
    %c0_25 = arith.constant 0 : index
    %c0_26 = arith.constant 0 : index
    %c0_27 = arith.constant 0 : index
    %29 = vector.load %arg10[%c0_25, %c0_26, %c0_27] : memref<1x1x16xf32, #tpu.memory_space<vmem>>, vector<1x1x16xf32>
    %30 = vector.shape_cast %29 : vector<1x1x16xf32> to vector<1x16xf32>
    %31 = vector.broadcast %30 : vector<1x16xf32> to vector<64x16xf32>
    %32 = arith.addf %28, %31 : vector<64x16xf32>
    %33 = vector.shape_cast %32 : vector<64x16xf32> to vector<4x16x16xf32>
    %34 = vector.shape_cast %24 : vector<4x16xf32> to vector<4x16x1xf32>
    %35 = vector.broadcast %34 : vector<4x16x1xf32> to vector<4x16x16xf32>
    %36 = arith.addf %33, %35 : vector<4x16x16xf32>
    %37 = math.tanh %36 : vector<4x16x16xf32>
    %c0_28 = arith.constant 0 : index
    %c0_29 = arith.constant 0 : index
    %c0_30 = arith.constant 0 : index
    %38 = vector.load %arg11[%c0_28, %c0_29, %c0_30] : memref<1x1x16xf32, #tpu.memory_space<vmem>>, vector<1x1x16xf32>
    %39 = vector.shape_cast %38 : vector<1x1x16xf32> to vector<1x16xf32>
    %40 = vector.shape_cast %39 : vector<1x16xf32> to vector<1x1x16xf32>
    %41 = vector.broadcast %40 : vector<1x1x16xf32> to vector<4x16x16xf32>
    %42 = arith.mulf %37, %41 : vector<4x16x16xf32>
    %cst_31 = arith.constant dense<0.000000e+00> : vector<4x16xf32>
    %43 = vector.multi_reduction <add>, %42, %cst_31 [2] : vector<4x16x16xf32> to vector<4x16xf32>
    %c0_32 = arith.constant 0 : index
    %c0_33 = arith.constant 0 : index
    %c0_34 = arith.constant 0 : index
    %44 = vector.load %arg12[%c0_32, %c0_33, %c0_34] : memref<1x1x1xf32, #tpu.memory_space<vmem>>, vector<1x1x1xf32>
    %45 = vector.shape_cast %44 : vector<1x1x1xf32> to vector<1x1xf32>
    %46 = vector.broadcast %45 : vector<1x1xf32> to vector<4x16xf32>
    %47 = arith.addf %43, %46 : vector<4x16xf32>
    %48 = math.exp %47 : vector<4x16xf32>
    %cst_35 = arith.constant dense<0.000000e+00> : vector<4xf32>
    %49 = vector.multi_reduction <add>, %48, %cst_35 [1] : vector<4x16xf32> to vector<4xf32>
    %50 = vector.shape_cast %49 : vector<4xf32> to vector<4x1xf32>
    %51 = tpu.reciprocal %50 {approx = true} : vector<4x1xf32> -> vector<4x1xf32>
    %52 = vector.broadcast %51 : vector<4x1xf32> to vector<4x16xf32>
    %53 = arith.mulf %48, %52 : vector<4x16xf32>
    %c0_36 = arith.constant 0 : index
    %c0_37 = arith.constant 0 : index
    %c0_38 = arith.constant 0 : index
    %54 = vector.load %arg6[%c0_36, %c0_37, %c0_38] : memref<4x16x64xf32, #tpu.memory_space<vmem>>, vector<4x16x64xf32>
    %55 = vector.shape_cast %53 : vector<4x16xf32> to vector<4x16x1xf32>
    %56 = vector.broadcast %55 : vector<4x16x1xf32> to vector<4x16x64xf32>
    %57 = arith.mulf %54, %56 : vector<4x16x64xf32>
    %cst_39 = arith.constant dense<0.000000e+00> : vector<4x64xf32>
    %58 = vector.multi_reduction <add>, %57, %cst_39 [1] : vector<4x16x64xf32> to vector<4x64xf32>
    %c0_40 = arith.constant 0 : index
    %c0_41 = arith.constant 0 : index
    %c0_42 = arith.constant 0 : index
    %59 = vector.load %arg13[%c0_40, %c0_41, %c0_42] : memref<1x64x256xf32, #tpu.memory_space<vmem>>, vector<1x64x256xf32>
    %60 = vector.shape_cast %59 : vector<1x64x256xf32> to vector<64x256xf32>
    %cst_43 = arith.constant dense<0.000000e+00> : vector<4x256xf32>
    %61 = tpu.matmul %58, %60, %cst_43 {dimension_numbers = #tpu.dot_dimension_numbers<[1], [0], [0], [1], [0, 0, 1, 1], [], []>} : vector<4x64xf32>, vector<64x256xf32>, vector<4x256xf32> -> vector<4x256xf32>
    %62 = arith.addf %23, %61 : vector<4x256xf32>
    %63 = vector.extract_strided_slice %62 {offsets = [0, 0], sizes = [4, 192], strides = [1, 1]} : vector<4x256xf32> to vector<4x192xf32>
    %64 = arith.negf %63 : vector<4x192xf32>
    %65 = math.exp %64 : vector<4x192xf32>
    %cst_44 = arith.constant 1.000000e+00 : f32
    %66 = vector.broadcast %cst_44 : f32 to vector<4x192xf32>
    %67 = arith.addf %66, %65 : vector<4x192xf32>
    %68 = arith.divf %66, %67 : vector<4x192xf32>
    %69 = vector.extract_strided_slice %68 {offsets = [0, 0], sizes = [4, 64], strides = [1, 1]} : vector<4x192xf32> to vector<4x64xf32>
    %70 = vector.extract_strided_slice %68 {offsets = [0, 64], sizes = [4, 64], strides = [1, 1]} : vector<4x192xf32> to vector<4x64xf32>
    %71 = vector.extract_strided_slice %68 {offsets = [0, 128], sizes = [4, 64], strides = [1, 1]} : vector<4x192xf32> to vector<4x64xf32>
    %72 = vector.extract_strided_slice %62 {offsets = [0, 192], sizes = [4, 64], strides = [1, 1]} : vector<4x256xf32> to vector<4x64xf32>
    %73 = math.tanh %72 : vector<4x64xf32>
    %74 = arith.mulf %70, %12 : vector<4x64xf32>
    %75 = arith.mulf %69, %73 : vector<4x64xf32>
    %76 = arith.addf %74, %75 : vector<4x64xf32>
    %77 = math.tanh %76 : vector<4x64xf32>
    %78 = arith.mulf %71, %77 : vector<4x64xf32>
    %c0_45 = arith.constant 0 : index
    %c0_46 = arith.constant 0 : index
    %79 = vector.load %arg15[%c0_45, %c0_46] : memref<4x64xf32, #tpu.memory_space<vmem>>, vector<4x64xf32>
    tpu.vector_store %arg15[%c0_45, %c0_46], %78 {strides = array<i32>} : memref<4x64xf32, #tpu.memory_space<vmem>>, vector<4x64xf32>,
    %80 = tpu.concatenate %76, %78 in 1 : vector<4x64xf32>, vector<4x64xf32> -> vector<4x128xf32>
    %c0_47 = arith.constant 0 : index
    %c0_48 = arith.constant 0 : index
    %81 = vector.load %arg14[%c0_47, %c0_48] : memref<4x128xf32, #tpu.memory_space<vmem>>, vector<4x128xf32>
    tpu.vector_store %arg14[%c0_47, %c0_48], %80 {strides = array<i32>} : memref<4x128xf32, #tpu.memory_space<vmem>>, vector<4x128xf32>,
    return
  }
  func.func @transform_0(%arg0: i32) -> (i32, i32) {
    %c0_i32 = arith.constant 0 : i32
    %c0_i32_0 = arith.constant 0 : i32
    %c0_i32_1 = arith.constant 0 : i32
    return %c0_i32, %c0_i32_0 : i32, i32
  }
  func.func @transform_1(%arg0: i32) -> (i32, i32) {
    %c0_i32 = arith.constant 0 : i32
    %c0_i32_0 = arith.constant 0 : i32
    %c0_i32_1 = arith.constant 0 : i32
    return %c0_i32, %c0_i32_0 : i32, i32
  }
  func.func @transform_2(%arg0: i32) -> (i32, i32, i32) {
    %c0_i32 = arith.constant 0 : i32
    %c0_i32_0 = arith.constant 0 : i32
    %c0_i32_1 = arith.constant 0 : i32
    return %arg0, %c0_i32, %c0_i32_0 : i32, i32, i32
  }
  func.func @transform_3(%arg0: i32) -> (i32, i32, i32) {
    %c0_i32 = arith.constant 0 : i32
    %c0_i32_0 = arith.constant 0 : i32
    %c0_i32_1 = arith.constant 0 : i32
    return %arg0, %c0_i32, %c0_i32_0 : i32, i32, i32
  }
  func.func @transform_4(%arg0: i32) -> (i32, i32) {
    %c0_i32 = arith.constant 0 : i32
    %c0_i32_0 = arith.constant 0 : i32
    %c0_i32_1 = arith.constant 0 : i32
    return %c0_i32, %c0_i32_0 : i32, i32
  }
  func.func @transform_5(%arg0: i32) -> (i32, i32, i32) {
    %c0_i32 = arith.constant 0 : i32
    %c0_i32_0 = arith.constant 0 : i32
    %c0_i32_1 = arith.constant 0 : i32
    %c0_i32_2 = arith.constant 0 : i32
    return %c0_i32, %c0_i32_0, %c0_i32_1 : i32, i32, i32
  }
  func.func @transform_6(%arg0: i32) -> (i32, i32, i32) {
    %c0_i32 = arith.constant 0 : i32
    %c0_i32_0 = arith.constant 0 : i32
    %c0_i32_1 = arith.constant 0 : i32
    return %arg0, %c0_i32, %c0_i32_0 : i32, i32, i32
  }
  func.func @transform_7(%arg0: i32) -> (i32, i32, i32) {
    %c0_i32 = arith.constant 0 : i32
    %c0_i32_0 = arith.constant 0 : i32
    %c0_i32_1 = arith.constant 0 : i32
    return %arg0, %c0_i32, %c0_i32_0 : i32, i32, i32
  }
  func.func @transform_8(%arg0: i32) -> (i32, i32, i32) {
    %c0_i32 = arith.constant 0 : i32
    %c0_i32_0 = arith.constant 0 : i32
    %c0_i32_1 = arith.constant 0 : i32
    return %arg0, %c0_i32, %c0_i32_0 : i32, i32, i32
  }
  func.func @transform_9(%arg0: i32) -> (i32, i32, i32) {
    %c0_i32 = arith.constant 0 : i32
    %c0_i32_0 = arith.constant 0 : i32
    %c0_i32_1 = arith.constant 0 : i32
    return %arg0, %c0_i32, %c0_i32_0 : i32, i32, i32
  }
  func.func @transform_10(%arg0: i32) -> (i32, i32, i32) {
    %c0_i32 = arith.constant 0 : i32
    %c0_i32_0 = arith.constant 0 : i32
    %c0_i32_1 = arith.constant 0 : i32
    return %arg0, %c0_i32, %c0_i32_0 : i32, i32, i32
  }
  func.func @transform_11(%arg0: i32) -> (i32, i32, i32) {
    %c0_i32 = arith.constant 0 : i32
    %c0_i32_0 = arith.constant 0 : i32
    %c0_i32_1 = arith.constant 0 : i32
    return %arg0, %c0_i32, %c0_i32_0 : i32, i32, i32
  }
  func.func @transform_12(%arg0: i32) -> (i32, i32, i32) {
    %c0_i32 = arith.constant 0 : i32
    %c0_i32_0 = arith.constant 0 : i32
    %c0_i32_1 = arith.constant 0 : i32
    return %arg0, %c0_i32, %c0_i32_0 : i32, i32, i32
  }
  func.func @transform_13(%arg0: i32) -> (i32, i32) {
    %c0_i32 = arith.constant 0 : i32
    %c0_i32_0 = arith.constant 0 : i32
    return %c0_i32, %arg0 : i32, i32
  }
}

</mosaic_0001>

<llo_original>
// kernel: tpu_custom_call.1
$region0: #{tpu_custom_call.1}
  #allocation0 [shape = 'u32[]', space=smem, size = 0x4, offset = 0x4, fixed_abs, tag = 'smem constant byte address 0x4 - core index']
  #allocation1 [shape = 'u32[144,128]{1,0:T(1,128)}', space=vmem, size = 0x12000, scoped, tag = 'internal scratch']
  #allocation2 [shape = 'f32[4,64]{1,0:T(4,128)}', space=vmem, size = 0x800, scoped, tag = 'scratch operand']
  %s0 = inlined_call_operand.vmem [shape: f32[4,64], index: 0, kind: input, shape index: {}]
  %s1 = inlined_call_operand.vmem [shape: f32[4,64], index: 1, kind: input, shape index: {}]
  %s2 = inlined_call_operand.vmem [shape: f32[2,4,64], index: 2, kind: input, shape index: {}]
  %s3 = inlined_call_operand.vmem [shape: f32[2,4,64], index: 3, kind: input, shape index: {}]
  %s4 = inlined_call_operand.vmem [shape: f32[64,64], index: 4, kind: input, shape index: {}]
  %s5 = inlined_call_operand.vmem [shape: f32[4,16,64], index: 5, kind: input, shape index: {}]
  %s6 = inlined_call_operand.vmem [shape: f32[2,128,272], index: 6, kind: input, shape index: {}]
  %s7 = inlined_call_operand.vmem [shape: f32[2,1,272], index: 7, kind: input, shape index: {}]
  %s8 = inlined_call_operand.vmem [shape: f32[2,64,16], index: 8, kind: input, shape index: {}]
  %s9 = inlined_call_operand.vmem [shape: f32[2,1,16], index: 9, kind: input, shape index: {}]
  %s10 = inlined_call_operand.vmem [shape: f32[2,1,16], index: 10, kind: input, shape index: {}]
  %s11 = inlined_call_operand.vmem [shape: f32[2,1,1], index: 11, kind: input, shape index: {}]
  %s12 = inlined_call_operand.vmem [shape: f32[2,64,256], index: 12, kind: input, shape index: {}]
  %s13 = inlined_call_operand.hbm [shape: f32[4,256], index: 13, kind: output, shape index: {}]
  %s14 = sld [smem:[#allocation0]]
  $region89: #{tpu_custom_call.1} parent=0
    _
  %s16 = ssub.s32 1, %s14
  %s17 = scalar_select 0, %s16, %s14
  $region1: #{tpu_custom_call.1} parent=0
    #allocation3 [shape = 'u8[4096]{0}', space=vmem, size = 0x1000, scoped, tag = 'output window, operand 0']
    #allocation4 [shape = 's32[2]{0}', space=sflag, size = 0x8, scoped, tag = 'scoped memory for tpu_custom_call.1']
    %18 = vsyncpa [#allocation4], 0
    %s19 = scalar_lea.sflag [#allocation4], 1
    %20 = vsyncpa %s19, 0
    loop: start=0, step=1, limit=4
    $region2: #{tpu_custom_call.1} parent=1 // loop_pre_header
      _
    $region3: #{tpu_custom_call.1} parent=1 // loop_header
      %s22 = sphi 0, %s26
      %p23 = scmp.ge.s32.totalorder %s22, 4
      %s30 = sphi 0, %s30
      %s32 = sphi 0, %s30
      %s33 = sphi 0, %s32
      %s47 = sphi 0, %s33
      %s51 = sphi 0, %s51
      %s53 = sphi 0, %s51
      %s54 = sphi 0, %s53
      %s68 = sphi 0, %s54
      %s74 = sphi 0, %s76
      %s77 = sphi 0, %s74
      %s78 = sphi 0, %s77
      %s94 = sphi 0, %s78
      %s100 = sphi 0, %s102
      %s103 = sphi 0, %s100
      %s104 = sphi 0, %s103
      %s120 = sphi 0, %s104
      %s124 = sphi 0, %s124
      %s126 = sphi 0, %s124
      %s127 = sphi 0, %s126
      %s141 = sphi 0, %s127
      %s145 = sphi 0, %s145
      %s147 = sphi 0, %s145
      %s148 = sphi 0, %s147
      %s162 = sphi 0, %s148
      %s168 = sphi 0, %s170
      %s171 = sphi 0, %s168
      %s172 = sphi 0, %s171
      %s188 = sphi 0, %s172
      %s194 = sphi 0, %s196
      %s197 = sphi 0, %s194
      %s198 = sphi 0, %s197
      %s214 = sphi 0, %s198
      %s220 = sphi 0, %s222
      %s223 = sphi 0, %s220
      %s224 = sphi 0, %s223
      %s240 = sphi 0, %s224
      %s246 = sphi 0, %s248
      %s249 = sphi 0, %s246
      %s250 = sphi 0, %s249
      %s266 = sphi 0, %s250
      %s272 = sphi 0, %s274
      %s275 = sphi 0, %s272
      %s276 = sphi 0, %s275
      %s292 = sphi 0, %s276
      %s298 = sphi 0, %s300
      %s301 = sphi 0, %s298
      %s302 = sphi 0, %s301
      %s318 = sphi 0, %s302
      %s324 = sphi 0, %s326
      %s327 = sphi 0, %s324
      %s328 = sphi 0, %s327
      %s344 = sphi 0, %s328
      %s350 = sphi 0, %s352
      %s353 = sphi 0, %s350
      %s354 = sphi 0, %s353
      %s370 = sphi 0, %s354
    $region4: #{tpu_custom_call.1} parent=1 // loop_header_branch
      %25 = sbr.rel (%p23) target = $region8
    $region5: #{tpu_custom_call.1} parent=1 // loop_body
      %s27 = ssub.s32 %s22, 1
      %s28 = ssub.s32 %s22, 2
      %s29 = sadd.s32 %s22, 1
      %s31 = sadd.s32 %s30, 1
      %p34 = scmp.eq.s32.totalorder %s22, 1
      %p35 = scmp.ne.s32.totalorder %s30, %s32
      %p36 = scmp.eq.s32.totalorder %s22, 0
      %p37 = por %p35, %p36
      %p38 = scmp.ne.s32.totalorder %s30, %s32
      %p39 = scmp.eq.s32.totalorder %s27, 1
      %p40 = por %p38, %p39
      %p41 = scmp.ne.s32.totalorder %s32, %s33
      %p42 = scmp.eq.s32.totalorder %s27, 0
      %p43 = por %p41, %p42
      %p44 = scmp.ne.s32.totalorder %s32, %s33
      %p45 = scmp.eq.s32.totalorder %s28, 1
      %p46 = por %p44, %p45
      %p48 = scmp.ne.s32.totalorder %s33, %s47
      %p49 = scmp.eq.s32.totalorder %s28, 0
      %p50 = por %p48, %p49
      %s52 = sadd.s32 %s51, 1
      %p55 = scmp.eq.s32.totalorder %s22, 1
      %p56 = scmp.ne.s32.totalorder %s51, %s53
      %p57 = scmp.eq.s32.totalorder %s22, 0
      %p58 = por %p56, %p57
      %p59 = scmp.ne.s32.totalorder %s51, %s53
      %p60 = scmp.eq.s32.totalorder %s27, 1
      %p61 = por %p59, %p60
      %p62 = scmp.ne.s32.totalorder %s53, %s54
      %p63 = scmp.eq.s32.totalorder %s27, 0
      %p64 = por %p62, %p63
      %p65 = scmp.ne.s32.totalorder %s53, %s54
      %p66 = scmp.eq.s32.totalorder %s28, 1
      %p67 = por %p65, %p66
      %p69 = scmp.ne.s32.totalorder %s54, %s68
      %p70 = scmp.eq.s32.totalorder %s28, 0
      %p71 = por %p69, %p70
      %s72 = ssub.s32 %s22, %s29
      %p73 = scmp.eq.s32.totalorder %s72, 0
      %s75 = sadd.s32 %s74, 1
      %s76 = scalar_select %p73, %s74, %s75
      %p79 = pneg %p73
      %p80 = scmp.eq.s32.totalorder %s22, 1
      %p81 = por %p79, %p80
      %p82 = scmp.ne.s32.totalorder %s74, %s77
      %p83 = scmp.eq.s32.totalorder %s22, 0
      %p84 = por %p82, %p83
      %p85 = scmp.ne.s32.totalorder %s74, %s77
      %p86 = scmp.eq.s32.totalorder %s27, 1
      %p87 = por %p85, %p86
      %p88 = scmp.ne.s32.totalorder %s77, %s78
      %p89 = scmp.eq.s32.totalorder %s27, 0
      %p90 = por %p88, %p89
      %p91 = scmp.ne.s32.totalorder %s77, %s78
      %p92 = scmp.eq.s32.totalorder %s28, 1
      %p93 = por %p91, %p92
      %p95 = scmp.ne.s32.totalorder %s78, %s94
      %p96 = scmp.eq.s32.totalorder %s28, 0
      %p97 = por %p95, %p96
      %s98 = ssub.s32 %s22, %s29
      %p99 = scmp.eq.s32.totalorder %s98, 0
      %s101 = sadd.s32 %s100, 1
      %s102 = scalar_select %p99, %s100, %s101
      %p105 = pneg %p99
      %p106 = scmp.eq.s32.totalorder %s22, 1
      %p107 = por %p105, %p106
      %p108 = scmp.ne.s32.totalorder %s100, %s103
      %p109 = scmp.eq.s32.totalorder %s22, 0
      %p110 = por %p108, %p109
      %p111 = scmp.ne.s32.totalorder %s100, %s103
      %p112 = scmp.eq.s32.totalorder %s27, 1
      %p113 = por %p111, %p112
      %p114 = scmp.ne.s32.totalorder %s103, %s104
      %p115 = scmp.eq.s32.totalorder %s27, 0
      %p116 = por %p114, %p115
      %p117 = scmp.ne.s32.totalorder %s103, %s104
      %p118 = scmp.eq.s32.totalorder %s28, 1
      %p119 = por %p117, %p118
      %p121 = scmp.ne.s32.totalorder %s104, %s120
      %p122 = scmp.eq.s32.totalorder %s28, 0
      %p123 = por %p121, %p122
      %s125 = sadd.s32 %s124, 1
      %p128 = scmp.eq.s32.totalorder %s22, 1
      %p129 = scmp.ne.s32.totalorder %s124, %s126
      %p130 = scmp.eq.s32.totalorder %s22, 0
      %p131 = por %p129, %p130
      %p132 = scmp.ne.s32.totalorder %s124, %s126
      %p133 = scmp.eq.s32.totalorder %s27, 1
      %p134 = por %p132, %p133
      %p135 = scmp.ne.s32.totalorder %s126, %s127
      %p136 = scmp.eq.s32.totalorder %s27, 0
      %p137 = por %p135, %p136
      %p138 = scmp.ne.s32.totalorder %s126, %s127
      %p139 = scmp.eq.s32.totalorder %s28, 1
      %p140 = por %p138, %p139
      %p142 = scmp.ne.s32.totalorder %s127, %s141
      %p143 = scmp.eq.s32.totalorder %s28, 0
      %p144 = por %p142, %p143
      %s146 = sadd.s32 %s145, 1
      %p149 = scmp.eq.s32.totalorder %s22, 1
      %p150 = scmp.ne.s32.totalorder %s145, %s147
      %p151 = scmp.eq.s32.totalorder %s22, 0
      %p152 = por %p150, %p151
      %p153 = scmp.ne.s32.totalorder %s145, %s147
      %p154 = scmp.eq.s32.totalorder %s27, 1
      %p155 = por %p153, %p154
      %p156 = scmp.ne.s32.totalorder %s147, %s148
      %p157 = scmp.eq.s32.totalorder %s27, 0
      %p158 = por %p156, %p157
      %p159 = scmp.ne.s32.totalorder %s147, %s148
      %p160 = scmp.eq.s32.totalorder %s28, 1
      %p161 = por %p159, %p160
      %p163 = scmp.ne.s32.totalorder %s148, %s162
      %p164 = scmp.eq.s32.totalorder %s28, 0
      %p165 = por %p163, %p164
      %s166 = ssub.s32 %s22, %s29
      %p167 = scmp.eq.s32.totalorder %s166, 0
      %s169 = sadd.s32 %s168, 1
      %s170 = scalar_select %p167, %s168, %s169
      %p173 = pneg %p167
      %p174 = scmp.eq.s32.totalorder %s22, 1
      %p175 = por %p173, %p174
      %p176 = scmp.ne.s32.totalorder %s168, %s171
      %p177 = scmp.eq.s32.totalorder %s22, 0
      %p178 = por %p176, %p177
      %p179 = scmp.ne.s32.totalorder %s168, %s171
      %p180 = scmp.eq.s32.totalorder %s27, 1
      %p181 = por %p179, %p180
      %p182 = scmp.ne.s32.totalorder %s171, %s172
      %p183 = scmp.eq.s32.totalorder %s27, 0
      %p184 = por %p182, %p183
      %p185 = scmp.ne.s32.totalorder %s171, %s172
      %p186 = scmp.eq.s32.totalorder %s28, 1
      %p187 = por %p185, %p186
      %p189 = scmp.ne.s32.totalorder %s172, %s188
      %p190 = scmp.eq.s32.totalorder %s28, 0
      %p191 = por %p189, %p190
      %s192 = ssub.s32 %s22, %s29
      %p193 = scmp.eq.s32.totalorder %s192, 0
      %s195 = sadd.s32 %s194, 1
      %s196 = scalar_select %p193, %s194, %s195
      %p199 = pneg %p193
      %p200 = scmp.eq.s32.totalorder %s22, 1
      %p201 = por %p199, %p200
      %p202 = scmp.ne.s32.totalorder %s194, %s197
      %p203 = scmp.eq.s32.totalorder %s22, 0
      %p204 = por %p202, %p203
      %p205 = scmp.ne.s32.totalorder %s194, %s197
      %p206 = scmp.eq.s32.totalorder %s27, 1
      %p207 = por %p205, %p206
      %p208 = scmp.ne.s32.totalorder %s197, %s198
      %p209 = scmp.eq.s32.totalorder %s27, 0
      %p210 = por %p208, %p209
      %p211 = scmp.ne.s32.totalorder %s197, %s198
      %p212 = scmp.eq.s32.totalorder %s28, 1
      %p213 = por %p211, %p212
      %p215 = scmp.ne.s32.totalorder %s198, %s214
      %p216 = scmp.eq.s32.totalorder %s28, 0
      %p217 = por %p215, %p216
      %s218 = ssub.s32 %s22, %s29
      %p219 = scmp.eq.s32.totalorder %s218, 0
      %s221 = sadd.s32 %s220, 1
      %s222 = scalar_select %p219, %s220, %s221
      %p225 = pneg %p219
      %p226 = scmp.eq.s32.totalorder %s22, 1
      %p227 = por %p225, %p226
      %p228 = scmp.ne.s32.totalorder %s220, %s223
      %p229 = scmp.eq.s32.totalorder %s22, 0
      %p230 = por %p228, %p229
      %p231 = scmp.ne.s32.totalorder %s220, %s223
      %p232 = scmp.eq.s32.totalorder %s27, 1
      %p233 = por %p231, %p232
      %p234 = scmp.ne.s32.totalorder %s223, %s224
      %p235 = scmp.eq.s32.totalorder %s27, 0
      %p236 = por %p234, %p235
      %p237 = scmp.ne.s32.totalorder %s223, %s224
      %p238 = scmp.eq.s32.totalorder %s28, 1
      %p239 = por %p237, %p238
      %p241 = scmp.ne.s32.totalorder %s224, %s240
      %p242 = scmp.eq.s32.totalorder %s28, 0
      %p243 = por %p241, %p242
      %s244 = ssub.s32 %s22, %s29
      %p245 = scmp.eq.s32.totalorder %s244, 0
      %s247 = sadd.s32 %s246, 1
      %s248 = scalar_select %p245, %s246, %s247
      %p251 = pneg %p245
      %p252 = scmp.eq.s32.totalorder %s22, 1
      %p253 = por %p251, %p252
      %p254 = scmp.ne.s32.totalorder %s246, %s249
      %p255 = scmp.eq.s32.totalorder %s22, 0
      %p256 = por %p254, %p255
      %p257 = scmp.ne.s32.totalorder %s246, %s249
      %p258 = scmp.eq.s32.totalorder %s27, 1
      %p259 = por %p257, %p258
      %p260 = scmp.ne.s32.totalorder %s249, %s250
      %p261 = scmp.eq.s32.totalorder %s27, 0
      %p262 = por %p260, %p261
      %p263 = scmp.ne.s32.totalorder %s249, %s250
      %p264 = scmp.eq.s32.totalorder %s28, 1
      %p265 = por %p263, %p264
      %p267 = scmp.ne.s32.totalorder %s250, %s266
      %p268 = scmp.eq.s32.totalorder %s28, 0
      %p269 = por %p267, %p268
      %s270 = ssub.s32 %s22, %s29
      %p271 = scmp.eq.s32.totalorder %s270, 0
      %s273 = sadd.s32 %s272, 1
      %s274 = scalar_select %p271, %s272, %s273
      %p277 = pneg %p271
      %p278 = scmp.eq.s32.totalorder %s22, 1
      %p279 = por %p277, %p278
      %p280 = scmp.ne.s32.totalorder %s272, %s275
      %p281 = scmp.eq.s32.totalorder %s22, 0
      %p282 = por %p280, %p281
      %p283 = scmp.ne.s32.totalorder %s272, %s275
      %p284 = scmp.eq.s32.totalorder %s27, 1
      %p285 = por %p283, %p284
      %p286 = scmp.ne.s32.totalorder %s275, %s276
      %p287 = scmp.eq.s32.totalorder %s27, 0
      %p288 = por %p286, %p287
      %p289 = scmp.ne.s32.totalorder %s275, %s276
      %p290 = scmp.eq.s32.totalorder %s28, 1
      %p291 = por %p289, %p290
      %p293 = scmp.ne.s32.totalorder %s276, %s292
      %p294 = scmp.eq.s32.totalorder %s28, 0
      %p295 = por %p293, %p294
      %s296 = ssub.s32 %s22, %s29
      %p297 = scmp.eq.s32.totalorder %s296, 0
      %s299 = sadd.s32 %s298, 1
      %s300 = scalar_select %p297, %s298, %s299
      %p303 = pneg %p297
      %p304 = scmp.eq.s32.totalorder %s22, 1
      %p305 = por %p303, %p304
      %p306 = scmp.ne.s32.totalorder %s298, %s301
      %p307 = scmp.eq.s32.totalorder %s22, 0
      %p308 = por %p306, %p307
      %p309 = scmp.ne.s32.totalorder %s298, %s301
      %p310 = scmp.eq.s32.totalorder %s27, 1
      %p311 = por %p309, %p310
      %p312 = scmp.ne.s32.totalorder %s301, %s302
      %p313 = scmp.eq.s32.totalorder %s27, 0
      %p314 = por %p312, %p313
      %p315 = scmp.ne.s32.totalorder %s301, %s302
      %p316 = scmp.eq.s32.totalorder %s28, 1
      %p317 = por %p315, %p316
      %p319 = scmp.ne.s32.totalorder %s302, %s318
      %p320 = scmp.eq.s32.totalorder %s28, 0
      %p321 = por %p319, %p320
      %s322 = ssub.s32 %s22, %s29
      %p323 = scmp.eq.s32.totalorder %s322, 0
      %s325 = sadd.s32 %s324, 1
      %s326 = scalar_select %p323, %s324, %s325
      %p329 = pneg %p323
      %p330 = scmp.eq.s32.totalorder %s22, 1
      %p331 = por %p329, %p330
      %p332 = scmp.ne.s32.totalorder %s324, %s327
      %p333 = scmp.eq.s32.totalorder %s22, 0
      %p334 = por %p332, %p333
      %p335 = scmp.ne.s32.totalorder %s324, %s327
      %p336 = scmp.eq.s32.totalorder %s27, 1
      %p337 = por %p335, %p336
      %p338 = scmp.ne.s32.totalorder %s327, %s328
      %p339 = scmp.eq.s32.totalorder %s27, 0
      %p340 = por %p338, %p339
      %p341 = scmp.ne.s32.totalorder %s327, %s328
      %p342 = scmp.eq.s32.totalorder %s28, 1
      %p343 = por %p341, %p342
      %p345 = scmp.ne.s32.totalorder %s328, %s344
      %p346 = scmp.eq.s32.totalorder %s28, 0
      %p347 = por %p345, %p346
      %s348 = ssub.s32 %s22, %s29
      %p349 = scmp.eq.s32.totalorder %s348, 0
      %s351 = sadd.s32 %s350, 1
      %s352 = scalar_select %p349, %s350, %s351
      %p355 = pneg %p349
      %p356 = scmp.eq.s32.totalorder %s22, 1
      %p357 = por %p355, %p356
      %p358 = scmp.ne.s32.totalorder %s350, %s353
      %p359 = scmp.eq.s32.totalorder %s22, 0
      %p360 = por %p358, %p359
      %p361 = scmp.ne.s32.totalorder %s350, %s353
      %p362 = scmp.eq.s32.totalorder %s27, 1
      %p363 = por %p361, %p362
      %p364 = scmp.ne.s32.totalorder %s353, %s354
      %p365 = scmp.eq.s32.totalorder %s27, 0
      %p366 = por %p364, %p365
      %p367 = scmp.ne.s32.totalorder %s353, %s354
      %p368 = scmp.eq.s32.totalorder %s28, 1
      %p369 = por %p367, %p368
      %p371 = scmp.ne.s32.totalorder %s354, %s370
      %p372 = scmp.eq.s32.totalorder %s28, 0
      %p373 = por %p371, %p372
      %p374 = scmp.le.s32.totalorder 1, %s22
      %p375 = scmp.lt.s32.totalorder %s22, 3
      %p376 = pnand %p374, %p375
      %p377 = pneg %p376
      // Predicated region
      $region9: #{tpu_custom_call.1} parent=5 // pred_check
        _
      $region10: #{tpu_custom_call.1} parent=5 // pred_check_branch
        %379 = sbr.rel (%p376) target = $region12
      $region11: #{tpu_custom_call.1} parent=5 // pred_region
        %s380 = ssub.s32 %s22, 1
        // Predicated region
        $region13: #{tpu_custom_call.1} parent=11 // pred_check
          %p381 = pneg %p43
        $region14: #{tpu_custom_call.1} parent=11 // pred_check_branch
          %383 = sbr.rel (%p381) target = $region16
        $region15: #{tpu_custom_call.1} parent=11 // pred_region
          _
        $region16: #{tpu_custom_call.1} parent=11 // pred_fallthru
          _
        // Predicated region
        $region17: #{tpu_custom_call.1} parent=11 // pred_check
          %p384 = pneg %p64
        $region18: #{tpu_custom_call.1} parent=11 // pred_check_branch
          %386 = sbr.rel (%p384) target = $region20
        $region19: #{tpu_custom_call.1} parent=11 // pred_region
          _
        $region20: #{tpu_custom_call.1} parent=11 // pred_fallthru
          _
        // Predicated region
        $region21: #{tpu_custom_call.1} parent=11 // pred_check
          %p387 = pneg %p137
        $region22: #{tpu_custom_call.1} parent=11 // pred_check_branch
          %389 = sbr.rel (%p387) target = $region24
        $region23: #{tpu_custom_call.1} parent=11 // pred_region
          _
        $region24: #{tpu_custom_call.1} parent=11 // pred_fallthru
          _
        // Predicated region
        $region25: #{tpu_custom_call.1} parent=11 // pred_check
          %p390 = pneg %p158
        $region26: #{tpu_custom_call.1} parent=11 // pred_check_branch
          %392 = sbr.rel (%p390) target = $region28
        $region27: #{tpu_custom_call.1} parent=11 // pred_region
          _
        $region28: #{tpu_custom_call.1} parent=11 // pred_fallthru
          _
      $region12: #{tpu_custom_call.1} parent=5 // pred_fallthru
        _
      %p393 = scmp.lt.s32.totalorder %s22, 2
      // Predicated region
      $region29: #{tpu_custom_call.1} parent=5 // pred_check
        %p394 = pneg %p393
      $region30: #{tpu_custom_call.1} parent=5 // pred_check_branch
        %396 = sbr.rel (%p394) target = $region32
      $region31: #{tpu_custom_call.1} parent=5 // pred_region
        // Predicated region
        $region33: #{tpu_custom_call.1} parent=31 // pred_check
          %p397 = pneg %p84
        $region34: #{tpu_custom_call.1} parent=31 // pred_check_branch
          %399 = sbr.rel (%p397) target = $region36
        $region35: #{tpu_custom_call.1} parent=31 // pred_region
          %p400 = scmp.lt.s32.totalorder %s22, 1
          %s401 = scalar_select %p400, %s22, 1
          %s402 = smul.addr %s401, 4
          %s403 = scalar_lea.vmem %s2, %s402
        $region36: #{tpu_custom_call.1} parent=31 // pred_fallthru
          _
        // Predicated region
        $region37: #{tpu_custom_call.1} parent=31 // pred_check
          %p404 = pneg %p110
        $region38: #{tpu_custom_call.1} parent=31 // pred_check_branch
          %406 = sbr.rel (%p404) target = $region40
        $region39: #{tpu_custom_call.1} parent=31 // pred_region
          %p407 = scmp.lt.s32.totalorder %s22, 1
          %s408 = scalar_select %p407, %s22, 1
          %s409 = smul.addr %s408, 4
          %s410 = scalar_lea.vmem %s3, %s409
        $region40: #{tpu_custom_call.1} parent=31 // pred_fallthru
          _
        // Predicated region
        $region41: #{tpu_custom_call.1} parent=31 // pred_check
          %p411 = pneg %p178
        $region42: #{tpu_custom_call.1} parent=31 // pred_check_branch
          %413 = sbr.rel (%p411) target = $region44
        $region43: #{tpu_custom_call.1} parent=31 // pred_region
          %p414 = scmp.lt.s32.totalorder %s22, 1
          %s415 = scalar_select %p414, %s22, 1
          %s416 = smul.addr %s415, 48
          %s417 = smul.addr %s416, 8
          %s418 = scalar_lea.vmem %s6, %s417
        $region44: #{tpu_custom_call.1} parent=31 // pred_fallthru
          _
        // Predicated region
        $region45: #{tpu_custom_call.1} parent=31 // pred_check
          %p419 = pneg %p204
        $region46: #{tpu_custom_call.1} parent=31 // pred_check_branch
          %421 = sbr.rel (%p419) target = $region48
        $region47: #{tpu_custom_call.1} parent=31 // pred_region
          %p422 = scmp.lt.s32.totalorder %s22, 1
          %s423 = scalar_select %p422, %s22, 1
          %s424 = smul.addr %s423, 3
          %s425 = scalar_lea.vmem %s7, %s424
        $region48: #{tpu_custom_call.1} parent=31 // pred_fallthru
          _
        // Predicated region
        $region49: #{tpu_custom_call.1} parent=31 // pred_check
          %p426 = pneg %p230
        $region50: #{tpu_custom_call.1} parent=31 // pred_check_branch
          %428 = sbr.rel (%p426) target = $region52
        $region51: #{tpu_custom_call.1} parent=31 // pred_region
          %p429 = scmp.lt.s32.totalorder %s22, 1
          %s430 = scalar_select %p429, %s22, 1
          %s431 = smul.addr %s430, 8
          %s432 = smul.addr %s431, 8
          %s433 = scalar_lea.vmem %s8, %s432
        $region52: #{tpu_custom_call.1} parent=31 // pred_fallthru
          _
        // Predicated region
        $region53: #{tpu_custom_call.1} parent=31 // pred_check
          %p434 = pneg %p256
        $region54: #{tpu_custom_call.1} parent=31 // pred_check_branch
          %436 = sbr.rel (%p434) target = $region56
        $region55: #{tpu_custom_call.1} parent=31 // pred_region
          %p437 = scmp.lt.s32.totalorder %s22, 1
          %s438 = scalar_select %p437, %s22, 1
          %s439 = scalar_lea.vmem %s9, %s438
        $region56: #{tpu_custom_call.1} parent=31 // pred_fallthru
          _
        // Predicated region
        $region57: #{tpu_custom_call.1} parent=31 // pred_check
          %p440 = pneg %p282
        $region58: #{tpu_custom_call.1} parent=31 // pred_check_branch
          %442 = sbr.rel (%p440) target = $region60
        $region59: #{tpu_custom_call.1} parent=31 // pred_region
          %p443 = scmp.lt.s32.totalorder %s22, 1
          %s444 = scalar_select %p443, %s22, 1
          %s445 = scalar_lea.vmem %s10, %s444
        $region60: #{tpu_custom_call.1} parent=31 // pred_fallthru
          _
        // Predicated region
        $region61: #{tpu_custom_call.1} parent=31 // pred_check
          %p446 = pneg %p308
        $region62: #{tpu_custom_call.1} parent=31 // pred_check_branch
          %448 = sbr.rel (%p446) target = $region64
        $region63: #{tpu_custom_call.1} parent=31 // pred_region
          %p449 = scmp.lt.s32.totalorder %s22, 1
          %s450 = scalar_select %p449, %s22, 1
          %s451 = scalar_lea.vmem %s11, %s450
        $region64: #{tpu_custom_call.1} parent=31 // pred_fallthru
          _
        // Predicated region
        $region65: #{tpu_custom_call.1} parent=31 // pred_check
          %p452 = pneg %p334
        $region66: #{tpu_custom_call.1} parent=31 // pred_check_branch
          %454 = sbr.rel (%p452) target = $region68
        $region67: #{tpu_custom_call.1} parent=31 // pred_region
          %p455 = scmp.lt.s32.totalorder %s22, 1
          %s456 = scalar_select %p455, %s22, 1
          %s457 = smul.addr %s456, 16
          %s458 = smul.addr %s457, 8
          %s459 = scalar_lea.vmem %s12, %s458
        $region68: #{tpu_custom_call.1} parent=31 // pred_fallthru
          _
      $region32: #{tpu_custom_call.1} parent=5 // pred_fallthru
        _
      %p460 = scmp.le.s32.totalorder 1, %s22
      %p461 = scmp.lt.s32.totalorder %s22, 3
      %p462 = pnand %p460, %p461
      %p463 = pneg %p462
      // Predicated region
      $region69: #{tpu_custom_call.1} parent=5 // pred_check
        _
      $region70: #{tpu_custom_call.1} parent=5 // pred_check_branch
        %465 = sbr.rel (%p462) target = $region72
      $region71: #{tpu_custom_call.1} parent=5 // pred_region
        %s466 = ssub.s32 %s22, 1
        %p467 = pneg %p43
        %p468 = pneg %p40
        %p469 = pneg %p64
        %p470 = pneg %p61
        %p471 = scmp.lt.s32.totalorder %s27, 1
        %s472 = scalar_select %p471, %s27, 1
        %s473 = smul.addr %s472, 4
        %s474 = scalar_lea.vmem %s2, %s473
        %p475 = pneg %p90
        %p476 = pneg %p87
        %p477 = scmp.lt.s32.totalorder %s27, 1
        %s478 = scalar_select %p477, %s27, 1
        %s479 = smul.addr %s478, 4
        %s480 = scalar_lea.vmem %s3, %s479
        %p481 = pneg %p116
        %p482 = pneg %p113
        %p483 = pneg %p137
        %p484 = pneg %p134
        %p485 = pneg %p158
        %p486 = pneg %p155
        %p487 = scmp.lt.s32.totalorder %s27, 1
        %s488 = scalar_select %p487, %s27, 1
        %s489 = smul.addr %s488, 48
        %s490 = smul.addr %s489, 8
        %s491 = scalar_lea.vmem %s6, %s490
        %p492 = pneg %p184
        %p493 = pneg %p181
        %p494 = scmp.lt.s32.totalorder %s27, 1
        %s495 = scalar_select %p494, %s27, 1
        %s496 = smul.addr %s495, 3
        %s497 = scalar_lea.vmem %s7, %s496
        %p498 = pneg %p210
        %p499 = pneg %p207
        %p500 = scmp.lt.s32.totalorder %s27, 1
        %s501 = scalar_select %p500, %s27, 1
        %s502 = smul.addr %s501, 8
        %s503 = smul.addr %s502, 8
        %s504 = scalar_lea.vmem %s8, %s503
        %p505 = pneg %p236
        %p506 = pneg %p233
        %p507 = scmp.lt.s32.totalorder %s27, 1
        %s508 = scalar_select %p507, %s27, 1
        %s509 = scalar_lea.vmem %s9, %s508
        %p510 = pneg %p262
        %p511 = pneg %p259
        %p512 = scmp.lt.s32.totalorder %s27, 1
        %s513 = scalar_select %p512, %s27, 1
        %s514 = scalar_lea.vmem %s10, %s513
        %p515 = pneg %p288
        %p516 = pneg %p285
        %p517 = scmp.lt.s32.totalorder %s27, 1
        %s518 = scalar_select %p517, %s27, 1
        %s519 = scalar_lea.vmem %s11, %s518
        %p520 = pneg %p314
        %p521 = pneg %p311
        %p522 = scmp.lt.s32.totalorder %s27, 1
        %s523 = scalar_select %p522, %s27, 1
        %s524 = smul.addr %s523, 16
        %s525 = smul.addr %s524, 8
        %s526 = scalar_lea.vmem %s12, %s525
        %p527 = pneg %p340
        %p528 = pneg %p337
        %p529 = pneg %p366
        %p530 = pneg %p363
        %s531 = sand.u32 %s353, 1
        %s532 = scalar_lea.sflag [#allocation4], %s531
        %s533 = sand.u32 %s353, 1
        %s534 = smul.addr %s533, 4
        %s535 = scalar_lea.vmem [#allocation3], %s534
        %p536 = scmp.lt.s32.totalorder %s27, 1
        %s537 = scalar_select %p536, %s27, 1
        %s538 = smul.addr %s537, 4
        %s539 = scalar_lea.vmem %s2, %s538
        %p540 = scmp.lt.s32.totalorder %s27, 1
        %s541 = scalar_select %p540, %s27, 1
        %s542 = smul.addr %s541, 4
        %s543 = scalar_lea.vmem %s3, %s542
        %p544 = scmp.lt.s32.totalorder %s27, 1
        %s545 = scalar_select %p544, %s27, 1
        %s546 = smul.addr %s545, 48
        %s547 = smul.addr %s546, 8
        %s548 = scalar_lea.vmem %s6, %s547
        %p549 = scmp.lt.s32.totalorder %s27, 1
        %s550 = scalar_select %p549, %s27, 1
        %s551 = smul.addr %s550, 3
        %s552 = scalar_lea.vmem %s7, %s551
        %p553 = scmp.lt.s32.totalorder %s27, 1
        %s554 = scalar_select %p553, %s27, 1
        %s555 = smul.addr %s554, 8
        %s556 = smul.addr %s555, 8
        %s557 = scalar_lea.vmem %s8, %s556
        %p558 = scmp.lt.s32.totalorder %s27, 1
        %s559 = scalar_select %p558, %s27, 1
        %s560 = scalar_lea.vmem %s9, %s559
        %p561 = scmp.lt.s32.totalorder %s27, 1
        %s562 = scalar_select %p561, %s27, 1
        %s563 = scalar_lea.vmem %s10, %s562
        %p564 = scmp.lt.s32.totalorder %s27, 1
        %s565 = scalar_select %p564, %s27, 1
        %s566 = scalar_lea.vmem %s11, %s565
        %p567 = scmp.lt.s32.totalorder %s27, 1
        %s568 = scalar_select %p567, %s27, 1
        %s569 = smul.addr %s568, 16
        %s570 = smul.addr %s569, 8
        %s571 = scalar_lea.vmem %s12, %s570
        %p572 = scmp.eq.s32.totalorder %s27, 0
        // Predicated region
        $region73: #{tpu_custom_call.1} parent=71 // pred_check
          %p573 = pneg %p572
        $region74: #{tpu_custom_call.1} parent=71 // pred_check_branch
          %575 = sbr.rel (%p573) target = $region76
        $region75: #{tpu_custom_call.1} parent=71 // pred_region
          %vm576 = vcmask 519168
          %577 = vst.msk [vmem:[#allocation2] sm:$0xf] %vm576, 0.0
        $region76: #{tpu_custom_call.1} parent=71 // pred_fallthru
          _
        %v578 = vld [vmem:[#allocation2] sm:$0xf]
        %v579 = vld [vmem:[%s0] sm:$0xf]
        %p580 = scmp.eq.s32.totalorder %s27, 1
        %v581 = vld [vmem:[%s1] sm:$0xf]
        %v582 = vadd.f32 %v581, %v578
        %s583 = scalar_select %p580, 1, 0
        %v584 = vstv %s583
        %vm585 = vcmp.eq.s32.totalorder %v584, 1
        %v586 = vsel %vm585, %v582, %v578
        %s587 = scalar_select %p572, 1, 0
        %v588 = vstv %s587
        %vm589 = vcmp.eq.s32.totalorder %v588, 1
        %v590 = vsel %vm589, %v579, %v586
        %v591 = vld [vmem:[%s539] sm:$0xf]
        %v592 = vld [vmem:[%s543] sm:$0xf]
        %594 = vrot.lane.b32.xlu0 %v592, 64
        %v595 = vpop.permute.xlu0 %594
        %vm597 = vcmask 523264
        %v598 = vsel %vm597, %v590, %v595
        %v599 = vld [vmem:[%s548] sm:$0xff]
        %v600 = vld [vmem:[%s548 + $0x8] sm:$0xff]
        %v601 = vld [vmem:[%s548 + $0x10] sm:$0xff]
        %v602 = vld [vmem:[%s548 + $0x18] sm:$0xff]
        %v603 = vld [vmem:[%s548 + $0x20] sm:$0xff]
        %v604 = vld [vmem:[%s548 + $0x28] sm:$0xff]
        %v605 = vld [vmem:[%s548 + $0x30] sm:$0xff]
        %v606 = vld [vmem:[%s548 + $0x38] sm:$0xff]
        %v607 = vld [vmem:[%s548 + $0x40] sm:$0xff]
        %v608 = vld [vmem:[%s548 + $0x48] sm:$0xff]
        %v609 = vld [vmem:[%s548 + $0x50] sm:$0xff]
        %v610 = vld [vmem:[%s548 + $0x58] sm:$0xff]
        %v611 = vld [vmem:[%s548 + $0x60] sm:$0xff]
        %v612 = vld [vmem:[%s548 + $0x68] sm:$0xff]
        %v613 = vld [vmem:[%s548 + $0x70] sm:$0xff]
        %v614 = vld [vmem:[%s548 + $0x78] sm:$0xff]
        %v615 = vld [vmem:[%s548 + $0x80] sm:$0xff]
        %v616 = vld [vmem:[%s548 + $0x88] sm:$0xff]
        %v617 = vld [vmem:[%s548 + $0x90] sm:$0xff]
        %v618 = vld [vmem:[%s548 + $0x98] sm:$0xff]
        %v619 = vld [vmem:[%s548 + $0xa0] sm:$0xff]
        %v620 = vld [vmem:[%s548 + $0xa8] sm:$0xff]
        %v621 = vld [vmem:[%s548 + $0xb0] sm:$0xff]
        %v622 = vld [vmem:[%s548 + $0xb8] sm:$0xff]
        %v623 = vld [vmem:[%s548 + $0xc0] sm:$0xff]
        %v624 = vld [vmem:[%s548 + $0xc8] sm:$0xff]
        %v625 = vld [vmem:[%s548 + $0xd0] sm:$0xff]
        %v626 = vld [vmem:[%s548 + $0xd8] sm:$0xff]
        %v627 = vld [vmem:[%s548 + $0xe0] sm:$0xff]
        %v628 = vld [vmem:[%s548 + $0xe8] sm:$0xff]
        %v629 = vld [vmem:[%s548 + $0xf0] sm:$0xff]
        %v630 = vld [vmem:[%s548 + $0xf8] sm:$0xff]
        %v631 = vld [vmem:[%s548 + $0x100] sm:$0xff]
        %v632 = vld [vmem:[%s548 + $0x108] sm:$0xff]
        %v633 = vld [vmem:[%s548 + $0x110] sm:$0xff]
        %v634 = vld [vmem:[%s548 + $0x118] sm:$0xff]
        %v635 = vld [vmem:[%s548 + $0x120] sm:$0xff]
        %v636 = vld [vmem:[%s548 + $0x128] sm:$0xff]
        %v637 = vld [vmem:[%s548 + $0x130] sm:$0xff]
        %v638 = vld [vmem:[%s548 + $0x138] sm:$0xff]
        %v639 = vld [vmem:[%s548 + $0x140] sm:$0xff]
        %v640 = vld [vmem:[%s548 + $0x148] sm:$0xff]
        %v641 = vld [vmem:[%s548 + $0x150] sm:$0xff]
        %v642 = vld [vmem:[%s548 + $0x158] sm:$0xff]
        %v643 = vld [vmem:[%s548 + $0x160] sm:$0xff]
        %v644 = vld [vmem:[%s548 + $0x168] sm:$0xff]
        %v645 = vld [vmem:[%s548 + $0x170] sm:$0xff]
        %v646 = vld [vmem:[%s548 + $0x178] sm:$0xff]
        %v647 = vld [vmem:[%s552] sm:$0x7]
        %v649 = vlaneseq
        %v650 = vshrl.u32 %v649, 7
        %v651 = vsub.s32 0, %v650
        %v652 = vrot.slane %v647, %v651
        %v653 = vlaneseq
        %v654 = vshrl.u32 %v653, 7
        %v655 = vsub.s32 1, %v654
        %v656 = vrot.slane %v647, %v655
        %v657 = vlaneseq
        %v658 = vshrl.u32 %v657, 7
        %v659 = vsub.s32 2, %v658
        %v660 = vrot.slane %v647, %v659
        %664 = vmatprep.subr.mxu0 %v645
        %665 = vmatpush1.msra.mxu0 %v644
        %666 = vmatprep.subr.mxu0 %v642
        %667 = vmatpush1.msra.mxu0 %v641
        %668 = vmatprep.subr.mxu0 %v639
        %669 = vmatpush1.msra.mxu0 %v638
        %670 = vmatprep.subr.mxu0 %v636
        %671 = vmatpush1.msra.mxu0 %v635
        %672 = vmatprep.subr.mxu0 %v633
        %673 = vmatpush1.msra.mxu0 %v632
        %674 = vmatprep.subr.mxu0 %v630
        %675 = vmatpush1.msra.mxu0 %v629
        %676 = vmatprep.subr.mxu0 %v627
        %677 = vmatpush1.msra.mxu0 %v626
        %678 = vmatprep.subr.mxu0 %v624
        %679 = vmatpush1.msra.mxu0 %v623
        %680 = vmatprep.subr.mxu0 %v621
        %681 = vmatpush1.msra.mxu0 %v620
        %682 = vmatprep.subr.mxu0 %v618
        %683 = vmatpush1.msra.mxu0 %v617
        %684 = vmatprep.subr.mxu0 %v615
        %685 = vmatpush1.msra.mxu0 %v614
        %686 = vmatprep.subr.mxu0 %v612
        %687 = vmatpush1.msra.mxu0 %v611
        %688 = vmatprep.subr.mxu0 %v609
        %689 = vmatpush1.msra.mxu0 %v608
        %690 = vmatprep.subr.mxu0 %v606
        %691 = vmatpush1.msra.mxu0 %v605
        %692 = vmatprep.subr.mxu0 %v603
        %693 = vmatpush1.msra.mxu0 %v602
        %694 = vmatprep.subr.mxu0 %v600
        %695 = vmatpush1.msra.mxu0 %v599
        %696 = vmatprep.subr.mxu0 0.0
        %697 = vmatpush2.msra.mxu0 0.0
        %698 = vmatprep.subr.mxu0 0.0
        %699 = vmatpush2.msra.mxu0 0.0
        %700 = vmatprep.subr.mxu0 0.0
        %701 = vmatpush2.msra.mxu0 0.0
        %702 = vmatprep.subr.mxu0 0.0
        %703 = vmatpush2.msra.mxu0 0.0
        %704 = vmatprep.subr.mxu0 0.0
        %705 = vmatpush2.msra.mxu0 0.0
        %706 = vmatprep.subr.mxu0 0.0
        %707 = vmatpush2.msra.mxu0 0.0
        %708 = vmatprep.subr.mxu0 0.0
        %709 = vmatpush2.msra.mxu0 0.0
        %710 = vmatprep.subr.mxu0 0.0
        %711 = vmatpush2.msra.mxu0 0.0
        %712 = vmatprep.subr.mxu0 0.0
        %713 = vmatpush2.msra.mxu0 0.0
        %714 = vmatprep.subr.mxu0 0.0
        %715 = vmatpush2.msra.mxu0 0.0
        %716 = vmatprep.subr.mxu0 0.0
        %717 = vmatpush2.msra.mxu0 0.0
        %718 = vmatprep.subr.mxu0 0.0
        %719 = vmatpush2.msra.mxu0 0.0
        %720 = vmatprep.subr.mxu0 0.0
        %721 = vmatpush2.msra.mxu0 0.0
        %722 = vmatprep.subr.mxu0 0.0
        %723 = vmatpush2.msra.mxu0 0.0
        %724 = vmatprep.subr.mxu0 0.0
        %725 = vmatpush2.msra.mxu0 0.0
        %726 = vmatprep.subr.mxu0 0.0
        %727 = vmatpush2.msra.mxu0 0.0
        %728 = vmatprep.mubr.f32.mxu0 0.0
        %729 = vmatmul.mubr.f32.gmra.mxu0 %v598
        %v730 = vpop.f32.mrf.mxu0
        %v731 = vadd.f32 %v652, %v730
        %v732 = vpop.f32.mrf.mxu0
        %v733 = vadd.f32 %v656, %v732
        %734 = vdwg.mxu0
        %735 = vmatprep.subr.mxu0 0.0
        %736 = vmatpush1.msra.mxu0 %v646
        %737 = vmatprep.subr.mxu0 0.0
        %738 = vmatpush1.msra.mxu0 %v643
        %739 = vmatprep.subr.mxu0 0.0
        %740 = vmatpush1.msra.mxu0 %v640
        %741 = vmatprep.subr.mxu0 0.0
        %742 = vmatpush1.msra.mxu0 %v637
        %743 = vmatprep.subr.mxu0 0.0
        %744 = vmatpush1.msra.mxu0 %v634
        %745 = vmatprep.subr.mxu0 0.0
        %746 = vmatpush1.msra.mxu0 %v631
        %747 = vmatprep.subr.mxu0 0.0
        %748 = vmatpush1.msra.mxu0 %v628
        %749 = vmatprep.subr.mxu0 0.0
        %750 = vmatpush1.msra.mxu0 %v625
        %751 = vmatprep.subr.mxu0 0.0
        %752 = vmatpush1.msra.mxu0 %v622
        %753 = vmatprep.subr.mxu0 0.0
        %754 = vmatpush1.msra.mxu0 %v619
        %755 = vmatprep.subr.mxu0 0.0
        %756 = vmatpush1.msra.mxu0 %v616
        %757 = vmatprep.subr.mxu0 0.0
        %758 = vmatpush1.msra.mxu0 %v613
        %759 = vmatprep.subr.mxu0 0.0
        %760 = vmatpush1.msra.mxu0 %v610
        %761 = vmatprep.subr.mxu0 0.0
        %762 = vmatpush1.msra.mxu0 %v607
        %763 = vmatprep.subr.mxu0 0.0
        %764 = vmatpush1.msra.mxu0 %v604
        %765 = vmatprep.subr.mxu0 0.0
        %766 = vmatpush1.msra.mxu0 %v601
        %767 = vmatprep.subr.mxu0 0.0
        %768 = vmatpush2.msra.mxu0 0.0
        %769 = vmatprep.subr.mxu0 0.0
        %770 = vmatpush2.msra.mxu0 0.0
        %771 = vmatprep.subr.mxu0 0.0
        %772 = vmatpush2.msra.mxu0 0.0
        %773 = vmatprep.subr.mxu0 0.0
        %774 = vmatpush2.msra.mxu0 0.0
        %775 = vmatprep.subr.mxu0 0.0
        %776 = vmatpush2.msra.mxu0 0.0
        %777 = vmatprep.subr.mxu0 0.0
        %778 = vmatpush2.msra.mxu0 0.0
        %779 = vmatprep.subr.mxu0 0.0
        %780 = vmatpush2.msra.mxu0 0.0
        %781 = vmatprep.subr.mxu0 0.0
        %782 = vmatpush2.msra.mxu0 0.0
        %783 = vmatprep.subr.mxu0 0.0
        %784 = vmatpush2.msra.mxu0 0.0
        %785 = vmatprep.subr.mxu0 0.0
        %786 = vmatpush2.msra.mxu0 0.0
        %787 = vmatprep.subr.mxu0 0.0
        %788 = vmatpush2.msra.mxu0 0.0
        %789 = vmatprep.subr.mxu0 0.0
        %790 = vmatpush2.msra.mxu0 0.0
        %791 = vmatprep.subr.mxu0 0.0
        %792 = vmatpush2.msra.mxu0 0.0
        %793 = vmatprep.subr.mxu0 0.0
        %794 = vmatpush2.msra.mxu0 0.0
        %795 = vmatprep.subr.mxu0 0.0
        %796 = vmatpush2.msra.mxu0 0.0
        %797 = vmatprep.subr.mxu0 0.0
        %798 = vmatpush2.msra.mxu0 0.0
        %799 = vmatprep.mubr.f32.mxu0 0.0
        %800 = vmatmul.mubr.f32.gmra.mxu0 %v598
        %v801 = vpop.f32.mrf.mxu0
        %v802 = vadd.f32 %v660, %v801
        %v803 = vpop.f32.mrf.mxu0
        %804 = vdwg.mxu0
        %v805 = vld [vmem:[%s4] sm:$0xff]
        %v806 = vld [vmem:[%s4 + $0x8] sm:$0xff]
        %v807 = vld [vmem:[%s4 + $0x10] sm:$0xff]
        %v808 = vld [vmem:[%s4 + $0x18] sm:$0xff]
        %v809 = vld [vmem:[%s4 + $0x20] sm:$0xff]
        %v810 = vld [vmem:[%s4 + $0x28] sm:$0xff]
        %v811 = vld [vmem:[%s4 + $0x30] sm:$0xff]
        %v812 = vld [vmem:[%s4 + $0x38] sm:$0xff]
        %v813 = vld [vmem:[%s557] sm:$0xff]
        %v814 = vld [vmem:[%s557 + $0x8] sm:$0xff]
        %v815 = vld [vmem:[%s557 + $0x10] sm:$0xff]
        %v816 = vld [vmem:[%s557 + $0x18] sm:$0xff]
        %v817 = vld [vmem:[%s557 + $0x20] sm:$0xff]
        %v818 = vld [vmem:[%s557 + $0x28] sm:$0xff]
        %v819 = vld [vmem:[%s557 + $0x30] sm:$0xff]
        %v820 = vld [vmem:[%s557 + $0x38] sm:$0xff]
        %v821 = vld [vmem:[%s560] sm:$0x1]
        %v823 = vlaneseq
        %v824 = vshrl.u32 %v823, 7
        %v825 = vsub.s32 0, %v824
        %v826 = vrot.slane %v821, %v825
        %v829 = vsel %vm597, %v805, 0
        %v832 = vsel %vm597, %v806, 0
        %v835 = vsel %vm597, %v807, 0
        %v838 = vsel %vm597, %v808, 0
        %v841 = vsel %vm597, %v809, 0
        %v844 = vsel %vm597, %v810, 0
        %v847 = vsel %vm597, %v811, 0
        %v850 = vsel %vm597, %v812, 0
        %852 = vmatprep.subr.mxu0 0.0
        %853 = vmatpush1.msra.mxu0 0.0
        %854 = vmatprep.subr.mxu0 0.0
        %855 = vmatpush1.msra.mxu0 0.0
        %856 = vmatprep.subr.mxu0 0.0
        %857 = vmatpush1.msra.mxu0 0.0
        %858 = vmatprep.subr.mxu0 0.0
        %859 = vmatpush1.msra.mxu0 0.0
        %860 = vmatprep.subr.mxu0 0.0
        %861 = vmatpush1.msra.mxu0 0.0
        %862 = vmatprep.subr.mxu0 0.0
        %863 = vmatpush1.msra.mxu0 0.0
        %864 = vmatprep.subr.mxu0 0.0
        %865 = vmatpush1.msra.mxu0 0.0
        %866 = vmatprep.subr.mxu0 0.0
        %867 = vmatpush1.msra.mxu0 0.0
        %868 = vmatprep.subr.mxu0 0.0
        %869 = vmatpush1.msra.mxu0 %v820
        %870 = vmatprep.subr.mxu0 0.0
        %871 = vmatpush1.msra.mxu0 %v819
        %872 = vmatprep.subr.mxu0 0.0
        %873 = vmatpush1.msra.mxu0 %v818
        %874 = vmatprep.subr.mxu0 0.0
        %875 = vmatpush1.msra.mxu0 %v817
        %876 = vmatprep.subr.mxu0 0.0
        %877 = vmatpush1.msra.mxu0 %v816
        %878 = vmatprep.subr.mxu0 0.0
        %879 = vmatpush1.msra.mxu0 %v815
        %880 = vmatprep.subr.mxu0 0.0
        %881 = vmatpush1.msra.mxu0 %v814
        %882 = vmatprep.subr.mxu0 0.0
        %883 = vmatpush1.msra.mxu0 %v813
        %884 = vmatprep.subr.mxu0 0.0
        %885 = vmatpush2.msra.mxu0 0.0
        %886 = vmatprep.subr.mxu0 0.0
        %887 = vmatpush2.msra.mxu0 0.0
        %888 = vmatprep.subr.mxu0 0.0
        %889 = vmatpush2.msra.mxu0 0.0
        %890 = vmatprep.subr.mxu0 0.0
        %891 = vmatpush2.msra.mxu0 0.0
        %892 = vmatprep.subr.mxu0 0.0
        %893 = vmatpush2.msra.mxu0 0.0
        %894 = vmatprep.subr.mxu0 0.0
        %895 = vmatpush2.msra.mxu0 0.0
        %896 = vmatprep.subr.mxu0 0.0
        %897 = vmatpush2.msra.mxu0 0.0
        %898 = vmatprep.subr.mxu0 0.0
        %899 = vmatpush2.msra.mxu0 0.0
        %900 = vmatprep.subr.mxu0 0.0
        %901 = vmatpush2.msra.mxu0 0.0
        %902 = vmatprep.subr.mxu0 0.0
        %903 = vmatpush2.msra.mxu0 0.0
        %904 = vmatprep.subr.mxu0 0.0
        %905 = vmatpush2.msra.mxu0 0.0
        %906 = vmatprep.subr.mxu0 0.0
        %907 = vmatpush2.msra.mxu0 0.0
        %908 = vmatprep.subr.mxu0 0.0
        %909 = vmatpush2.msra.mxu0 0.0
        %910 = vmatprep.subr.mxu0 0.0
        %911 = vmatpush2.msra.mxu0 0.0
        %912 = vmatprep.subr.mxu0 0.0
        %913 = vmatpush2.msra.mxu0 0.0
        %914 = vmatprep.subr.mxu0 0.0
        %915 = vmatpush2.msra.mxu0 0.0
        %916 = vmatprep.mubr.f32.mxu0 0.0
        %917 = vmatmul.mubr.f32.gmra.mxu0 %v829
        %v918 = vpop.f32.mrf.mxu0
        %v919 = vadd.f32 %v826, %v918
        %v920 = vpop.f32.mrf.mxu0
        %921 = vmatprep.mubr.f32.mxu0 0.0
        %922 = vmatmul.mubr.f32.gmra.mxu0 %v832
        %v923 = vpop.f32.mrf.mxu0
        %v924 = vadd.f32 %v826, %v923
        %v925 = vpop.f32.mrf.mxu0
        %926 = vmatprep.mubr.f32.mxu0 0.0
        %927 = vmatmul.mubr.f32.gmra.mxu0 %v835
        %v928 = vpop.f32.mrf.mxu0
        %v929 = vadd.f32 %v826, %v928
        %v930 = vpop.f32.mrf.mxu0
        %931 = vmatprep.mubr.f32.mxu0 0.0
        %932 = vmatmul.mubr.f32.gmra.mxu0 %v838
        %v933 = vpop.f32.mrf.mxu0
        %v934 = vadd.f32 %v826, %v933
        %v935 = vpop.f32.mrf.mxu0
        %936 = vmatprep.mubr.f32.mxu0 0.0
        %937 = vmatmul.mubr.f32.gmra.mxu0 %v841
        %v938 = vpop.f32.mrf.mxu0
        %v939 = vadd.f32 %v826, %v938
        %v940 = vpop.f32.mrf.mxu0
        %941 = vmatprep.mubr.f32.mxu0 0.0
        %942 = vmatmul.mubr.f32.gmra.mxu0 %v844
        %v943 = vpop.f32.mrf.mxu0
        %v944 = vadd.f32 %v826, %v943
        %v945 = vpop.f32.mrf.mxu0
        %946 = vmatprep.mubr.f32.mxu0 0.0
        %947 = vmatmul.mubr.f32.gmra.mxu0 %v847
        %v948 = vpop.f32.mrf.mxu0
        %v949 = vadd.f32 %v826, %v948
        %v950 = vpop.f32.mrf.mxu0
        %951 = vmatprep.mubr.f32.mxu0 0.0
        %952 = vmatmul.mubr.f32.gmra.mxu0 %v850
        %v953 = vpop.f32.mrf.mxu0
        %v954 = vadd.f32 %v826, %v953
        %v955 = vpop.f32.mrf.mxu0
        %956 = vdwg.mxu0
        %v957 = vlaneseq
        %v958 = vshrl.u32 %v957, 7
        %v959 = vsub.s32 0, %v958
        %v960 = vrot.slane %v802, %v959
        %962 = vbcast.lane.b32.xlu0 %v960, 256
        %v963 = vpop.permute.xlu0 %962
        %s965 = sor.u32 256, 8
        %966 = vbcast.lane.b32.xlu0 %v960, %s965
        %v967 = vpop.permute.xlu0 %966
        %v968 = vlaneseq
        %v969 = vshrl.u32 %v968, 7
        %v970 = vsub.s32 1, %v969
        %v971 = vrot.slane %v802, %v970
        %973 = vbcast.lane.b32.xlu0 %v971, 256
        %v974 = vpop.permute.xlu0 %973
        %s976 = sor.u32 256, 8
        %977 = vbcast.lane.b32.xlu0 %v971, %s976
        %v978 = vpop.permute.xlu0 %977
        %v979 = vlaneseq
        %v980 = vshrl.u32 %v979, 7
        %v981 = vsub.s32 2, %v980
        %v982 = vrot.slane %v802, %v981
        %984 = vbcast.lane.b32.xlu0 %v982, 256
        %v985 = vpop.permute.xlu0 %984
        %s987 = sor.u32 256, 8
        %988 = vbcast.lane.b32.xlu0 %v982, %s987
        %v989 = vpop.permute.xlu0 %988
        %v990 = vlaneseq
        %v991 = vshrl.u32 %v990, 7
        %v992 = vsub.s32 3, %v991
        %v993 = vrot.slane %v802, %v992
        %995 = vbcast.lane.b32.xlu0 %v993, 256
        %v996 = vpop.permute.xlu0 %995
        %s998 = sor.u32 256, 8
        %999 = vbcast.lane.b32.xlu0 %v993, %s998
        %v1000 = vpop.permute.xlu0 %999
        %v1001 = vadd.f32 %v919, %v963
        %v1002 = vadd.f32 %v924, %v967
        %v1003 = vadd.f32 %v929, %v974
        %v1004 = vadd.f32 %v934, %v978
        %v1005 = vadd.f32 %v939, %v985
        %v1006 = vadd.f32 %v944, %v989
        %v1007 = vadd.f32 %v949, %v996
        %v1008 = vadd.f32 %v954, %v1000
        %v1009 = vtanh.pop %v1001
        %v1010 = vtanh.pop %v1002
        %v1011 = vtanh.pop %v1003
        %v1012 = vtanh.pop %v1004
        %v1013 = vtanh.pop %v1005
        %v1014 = vtanh.pop %v1006
        %v1015 = vtanh.pop %v1007
        %v1016 = vtanh.pop %v1008
        %v1017 = vld [vmem:[%s563] sm:$0x1]
        %v1019 = vlaneseq
        %v1020 = vshrl.u32 %v1019, 7
        %v1021 = vsub.s32 0, %v1020
        %v1022 = vrot.slane %v1017, %v1021
        %v1024 = vmul.f32 %v1009, %v1022
        %v1025 = vmul.f32 %v1010, %v1022
        %v1026 = vmul.f32 %v1011, %v1022
        %v1027 = vmul.f32 %v1012, %v1022
        %v1028 = vmul.f32 %v1013, %v1022
        %v1029 = vmul.f32 %v1014, %v1022
        %v1030 = vmul.f32 %v1015, %v1022
        %v1031 = vmul.f32 %v1016, %v1022
        %vm1032 = vcmask 130048
        %v1033 = vsel %vm1032, %v1024, 0.0
        %1034 = vadd.xlane.f32.xlu0 %v1033
        %v1035 = vpop.xlane.xlu0 %1034
        %v1036 = vsel %vm1032, %v1025, 0.0
        %1037 = vadd.xlane.f32.xlu0 %v1036
        %v1038 = vpop.xlane.xlu0 %1037
        %v1039 = vsel %vm1032, %v1026, 0.0
        %1040 = vadd.xlane.f32.xlu0 %v1039
        %v1041 = vpop.xlane.xlu0 %1040
        %v1042 = vsel %vm1032, %v1027, 0.0
        %1043 = vadd.xlane.f32.xlu0 %v1042
        %v1044 = vpop.xlane.xlu0 %1043
        %v1045 = vsel %vm1032, %v1028, 0.0
        %1046 = vadd.xlane.f32.xlu0 %v1045
        %v1047 = vpop.xlane.xlu0 %1046
        %v1048 = vsel %vm1032, %v1029, 0.0
        %1049 = vadd.xlane.f32.xlu0 %v1048
        %v1050 = vpop.xlane.xlu0 %1049
        %v1051 = vsel %vm1032, %v1030, 0.0
        %1052 = vadd.xlane.f32.xlu0 %v1051
        %v1053 = vpop.xlane.xlu0 %1052
        %v1054 = vsel %vm1032, %v1031, 0.0
        %1055 = vadd.xlane.f32.xlu0 %v1054
        %v1056 = vpop.xlane.xlu0 %1055
        %v1057 = vld [vmem:[%s566] sm:$0x1]
        %v1059 = vlaneseq
        %v1060 = vshrl.u32 %v1059, 7
        %v1061 = vsub.s32 0, %v1060
        %v1062 = vrot.slane %v1057, %v1061
        %1063 = vset.pattern.permute.xlu0 0
        %1064 = vperm.xlu0 %1063, %v1062
        %v1065 = vpop.permute.xlu0 %1064
        %v1067 = vadd.f32 %v1035, %v1065
        %v1068 = vadd.f32 %v1038, %v1065
        %v1069 = vadd.f32 %v1041, %v1065
        %v1070 = vadd.f32 %v1044, %v1065
        %v1071 = vadd.f32 %v1047, %v1065
        %v1072 = vadd.f32 %v1050, %v1065
        %v1073 = vadd.f32 %v1053, %v1065
        %v1074 = vadd.f32 %v1056, %v1065
        %v1075 = vmul.f32 %v1067, 1.442695
        %v1076 = vpow.pop %v1075
        %v1077 = vmul.f32 %v1068, 1.442695
        %v1078 = vpow.pop %v1077
        %v1079 = vmul.f32 %v1069, 1.442695
        %v1080 = vpow.pop %v1079
        %v1081 = vmul.f32 %v1070, 1.442695
        %v1082 = vpow.pop %v1081
        %v1083 = vmul.f32 %v1071, 1.442695
        %v1084 = vpow.pop %v1083
        %v1085 = vmul.f32 %v1072, 1.442695
        %v1086 = vpow.pop %v1085
        %v1087 = vmul.f32 %v1073, 1.442695
        %v1088 = vpow.pop %v1087
        %v1089 = vmul.f32 %v1074, 1.442695
        %v1090 = vpow.pop %v1089
        %v1099 = vlaneseq
        %v1100 = vand.u32 %v1099, 127
        %v1101 = vlaneseq
        %v1102 = vshrl.u32 %v1101, 7
        %v1103 = vsub.s32 %v1100, %v1102
        %v1104 = vrot.slane %v1076, %v1103
        %v1105 = vadd.s32 %v1100, 4294967288
        %v1106 = vlaneseq
        %v1107 = vshrl.u32 %v1106, 7
        %v1108 = vsub.s32 %v1105, %v1107
        %v1109 = vrot.slane %v1078, %v1108
        %vm1110 = vcmask 130112
        %v1111 = vsel %vm1110, %v1109, %v1104
        %v1112 = vlaneseq
        %v1113 = vshrl.u32 %v1112, 7
        %v1114 = vsub.s32 %v1100, %v1113
        %v1115 = vrot.slane %v1080, %v1114
        %v1116 = vlaneseq
        %v1117 = vshrl.u32 %v1116, 7
        %v1118 = vsub.s32 %v1105, %v1117
        %v1119 = vrot.slane %v1082, %v1118
        %v1120 = vsel %vm1110, %v1119, %v1115
        %v1121 = vlaneseq
        %v1122 = vshrl.u32 %v1121, 7
        %v1123 = vsub.s32 %v1100, %v1122
        %v1124 = vrot.slane %v1084, %v1123
        %v1125 = vlaneseq
        %v1126 = vshrl.u32 %v1125, 7
        %v1127 = vsub.s32 %v1105, %v1126
        %v1128 = vrot.slane %v1086, %v1127
        %v1129 = vsel %vm1110, %v1128, %v1124
        %v1130 = vlaneseq
        %v1131 = vshrl.u32 %v1130, 7
        %v1132 = vsub.s32 %v1100, %v1131
        %v1133 = vrot.slane %v1088, %v1132
        %v1134 = vlaneseq
        %v1135 = vshrl.u32 %v1134, 7
        %v1136 = vsub.s32 %v1105, %v1135
        %v1137 = vrot.slane %v1090, %v1136
        %v1138 = vsel %vm1110, %v1137, %v1133
        %vm1139 = vcmask 1041409
        %v1140 = vsel %vm1139, %v1120, %v1111
        %vm1141 = vcmask 1042434
        %v1142 = vsel %vm1141, %v1129, %v1140
        %vm1143 = vcmask 1043459
        %v1144 = vsel %vm1143, %v1138, %v1142
        %vm1146 = vcmask 125952
        %v1147 = vsel %vm1146, %v1144, 0.0
        %1148 = vadd.xlane.f32.xlu0 %v1147
        %v1149 = vpop.xlane.xlu0 %1148
        %v1150 = vrcp.pop %v1149
        %v1152 = vlaneseq
        %v1153 = vshrl.u32 %v1152, 7
        %v1154 = vsub.s32 0, %v1153
        %v1155 = vrot.slane %v1150, %v1154
        %v1156 = vlaneseq
        %v1157 = vshrl.u32 %v1156, 7
        %v1158 = vsub.s32 1, %v1157
        %v1159 = vrot.slane %v1150, %v1158
        %v1160 = vlaneseq
        %v1161 = vshrl.u32 %v1160, 7
        %v1162 = vsub.s32 2, %v1161
        %v1163 = vrot.slane %v1150, %v1162
        %v1164 = vlaneseq
        %v1165 = vshrl.u32 %v1164, 7
        %v1166 = vsub.s32 3, %v1165
        %v1167 = vrot.slane %v1150, %v1166
        %v1172 = vmul.f32 %v1076, %v1155
        %v1173 = vmul.f32 %v1078, %v1155
        %v1174 = vmul.f32 %v1080, %v1159
        %v1175 = vmul.f32 %v1082, %v1159
        %v1176 = vmul.f32 %v1084, %v1163
        %v1177 = vmul.f32 %v1086, %v1163
        %v1178 = vmul.f32 %v1088, %v1167
        %v1179 = vmul.f32 %v1090, %v1167
        %v1180 = vld [vmem:[%s5] sm:$0xff]
        %v1181 = vld [vmem:[%s5 + $0x8] sm:$0xff]
        %v1182 = vld [vmem:[%s5 + $0x10] sm:$0xff]
        %v1183 = vld [vmem:[%s5 + $0x18] sm:$0xff]
        %v1184 = vld [vmem:[%s5 + $0x20] sm:$0xff]
        %v1185 = vld [vmem:[%s5 + $0x28] sm:$0xff]
        %v1186 = vld [vmem:[%s5 + $0x30] sm:$0xff]
        %v1187 = vld [vmem:[%s5 + $0x38] sm:$0xff]
        %1189 = vset.pattern.permute.xlu0 0
        %1190 = vperm.xlu0 %1189, %v1172
        %v1191 = vpop.permute.xlu0 %1190
        %1194 = vset.pattern.permute.xlu0 0
        %1195 = vperm.xlu0 %1194, %v1173
        %v1196 = vpop.permute.xlu0 %1195
        %1199 = vset.pattern.permute.xlu0 0
        %1200 = vperm.xlu0 %1199, %v1174
        %v1201 = vpop.permute.xlu0 %1200
        %1204 = vset.pattern.permute.xlu0 0
        %1205 = vperm.xlu0 %1204, %v1175
        %v1206 = vpop.permute.xlu0 %1205
        %1209 = vset.pattern.permute.xlu0 0
        %1210 = vperm.xlu0 %1209, %v1176
        %v1211 = vpop.permute.xlu0 %1210
        %1214 = vset.pattern.permute.xlu0 0
        %1215 = vperm.xlu0 %1214, %v1177
        %v1216 = vpop.permute.xlu0 %1215
        %1219 = vset.pattern.permute.xlu0 0
        %1220 = vperm.xlu0 %1219, %v1178
        %v1221 = vpop.permute.xlu0 %1220
        %1224 = vset.pattern.permute.xlu0 0
        %1225 = vperm.xlu0 %1224, %v1179
        %v1226 = vpop.permute.xlu0 %1225
        %v1228 = vmul.f32 %v1180, %v1191
        %v1229 = vmul.f32 %v1181, %v1196
        %v1230 = vmul.f32 %v1182, %v1201
        %v1231 = vmul.f32 %v1183, %v1206
        %v1232 = vmul.f32 %v1184, %v1211
        %v1233 = vmul.f32 %v1185, %v1216
        %v1234 = vmul.f32 %v1186, %v1221
        %v1235 = vmul.f32 %v1187, %v1226
        %v1236 = vsel %vm597, %v1228, 0.0
        %v1237 = vsel %vm597, %v1229, 0.0
        %v1238 = vadd.f32 %v1236, %v1237
        %v1239 = vrot.slane %v1238, 4
        %v1240 = vadd.f32 %v1238, %v1239
        %v1241 = vrot.slane %v1240, 2
        %v1242 = vadd.f32 %v1240, %v1241
        %v1243 = vrot.slane %v1242, 1
        %v1244 = vadd.f32 %v1242, %v1243
        %v1245 = vsel %vm597, %v1230, 0.0
        %v1246 = vsel %vm597, %v1231, 0.0
        %v1247 = vadd.f32 %v1245, %v1246
        %v1248 = vrot.slane %v1247, 4
        %v1249 = vadd.f32 %v1247, %v1248
        %v1250 = vrot.slane %v1249, 2
        %v1251 = vadd.f32 %v1249, %v1250
        %v1252 = vrot.slane %v1251, 1
        %v1253 = vadd.f32 %v1251, %v1252
        %v1254 = vsel %vm597, %v1232, 0.0
        %v1255 = vsel %vm597, %v1233, 0.0
        %v1256 = vadd.f32 %v1254, %v1255
        %v1257 = vrot.slane %v1256, 4
        %v1258 = vadd.f32 %v1256, %v1257
        %v1259 = vrot.slane %v1258, 2
        %v1260 = vadd.f32 %v1258, %v1259
        %v1261 = vrot.slane %v1260, 1
        %v1262 = vadd.f32 %v1260, %v1261
        %v1263 = vsel %vm597, %v1234, 0.0
        %v1264 = vsel %vm597, %v1235, 0.0
        %v1265 = vadd.f32 %v1263, %v1264
        %v1266 = vrot.slane %v1265, 4
        %v1267 = vadd.f32 %v1265, %v1266
        %v1268 = vrot.slane %v1267, 2
        %v1269 = vadd.f32 %v1267, %v1268
        %v1270 = vrot.slane %v1269, 1
        %v1271 = vadd.f32 %v1269, %v1270
        %v1272 = vld [vmem:[%s571] sm:$0xff]
        %v1273 = vld [vmem:[%s571 + $0x8] sm:$0xff]
        %v1274 = vld [vmem:[%s571 + $0x10] sm:$0xff]
        %v1275 = vld [vmem:[%s571 + $0x18] sm:$0xff]
        %v1276 = vld [vmem:[%s571 + $0x20] sm:$0xff]
        %v1277 = vld [vmem:[%s571 + $0x28] sm:$0xff]
        %v1278 = vld [vmem:[%s571 + $0x30] sm:$0xff]
        %v1279 = vld [vmem:[%s571 + $0x38] sm:$0xff]
        %v1280 = vld [vmem:[%s571 + $0x40] sm:$0xff]
        %v1281 = vld [vmem:[%s571 + $0x48] sm:$0xff]
        %v1282 = vld [vmem:[%s571 + $0x50] sm:$0xff]
        %v1283 = vld [vmem:[%s571 + $0x58] sm:$0xff]
        %v1284 = vld [vmem:[%s571 + $0x60] sm:$0xff]
        %v1285 = vld [vmem:[%s571 + $0x68] sm:$0xff]
        %v1286 = vld [vmem:[%s571 + $0x70] sm:$0xff]
        %v1287 = vld [vmem:[%s571 + $0x78] sm:$0xff]
        %v1292 = vsel %vm1139, %v1253, %v1244
        %v1293 = vsel %vm1141, %v1262, %v1292
        %v1294 = vsel %vm1143, %v1271, %v1293
        %v1295 = vsel %vm597, %v1294, 0
        %1297 = vmatprep.subr.mxu0 0.0
        %1298 = vmatpush1.msra.mxu0 0.0
        %1299 = vmatprep.subr.mxu0 0.0
        %1300 = vmatpush1.msra.mxu0 0.0
        %1301 = vmatprep.subr.mxu0 0.0
        %1302 = vmatpush1.msra.mxu0 0.0
        %1303 = vmatprep.subr.mxu0 0.0
        %1304 = vmatpush1.msra.mxu0 0.0
        %1305 = vmatprep.subr.mxu0 0.0
        %1306 = vmatpush1.msra.mxu0 0.0
        %1307 = vmatprep.subr.mxu0 0.0
        %1308 = vmatpush1.msra.mxu0 0.0
        %1309 = vmatprep.subr.mxu0 0.0
        %1310 = vmatpush1.msra.mxu0 0.0
        %1311 = vmatprep.subr.mxu0 0.0
        %1312 = vmatpush1.msra.mxu0 0.0
        %1313 = vmatprep.subr.mxu0 %v1287
        %1314 = vmatpush1.msra.mxu0 %v1286
        %1315 = vmatprep.subr.mxu0 %v1285
        %1316 = vmatpush1.msra.mxu0 %v1284
        %1317 = vmatprep.subr.mxu0 %v1283
        %1318 = vmatpush1.msra.mxu0 %v1282
        %1319 = vmatprep.subr.mxu0 %v1281
        %1320 = vmatpush1.msra.mxu0 %v1280
        %1321 = vmatprep.subr.mxu0 %v1279
        %1322 = vmatpush1.msra.mxu0 %v1278
        %1323 = vmatprep.subr.mxu0 %v1277
        %1324 = vmatpush1.msra.mxu0 %v1276
        %1325 = vmatprep.subr.mxu0 %v1275
        %1326 = vmatpush1.msra.mxu0 %v1274
        %1327 = vmatprep.subr.mxu0 %v1273
        %1328 = vmatpush1.msra.mxu0 %v1272
        %1329 = vmatprep.subr.mxu0 0.0
        %1330 = vmatpush2.msra.mxu0 0.0
        %1331 = vmatprep.subr.mxu0 0.0
        %1332 = vmatpush2.msra.mxu0 0.0
        %1333 = vmatprep.subr.mxu0 0.0
        %1334 = vmatpush2.msra.mxu0 0.0
        %1335 = vmatprep.subr.mxu0 0.0
        %1336 = vmatpush2.msra.mxu0 0.0
        %1337 = vmatprep.subr.mxu0 0.0
        %1338 = vmatpush2.msra.mxu0 0.0
        %1339 = vmatprep.subr.mxu0 0.0
        %1340 = vmatpush2.msra.mxu0 0.0
        %1341 = vmatprep.subr.mxu0 0.0
        %1342 = vmatpush2.msra.mxu0 0.0
        %1343 = vmatprep.subr.mxu0 0.0
        %1344 = vmatpush2.msra.mxu0 0.0
        %1345 = vmatprep.subr.mxu0 0.0
        %1346 = vmatpush2.msra.mxu0 0.0
        %1347 = vmatprep.subr.mxu0 0.0
        %1348 = vmatpush2.msra.mxu0 0.0
        %1349 = vmatprep.subr.mxu0 0.0
        %1350 = vmatpush2.msra.mxu0 0.0
        %1351 = vmatprep.subr.mxu0 0.0
        %1352 = vmatpush2.msra.mxu0 0.0
        %1353 = vmatprep.subr.mxu0 0.0
        %1354 = vmatpush2.msra.mxu0 0.0
        %1355 = vmatprep.subr.mxu0 0.0
        %1356 = vmatpush2.msra.mxu0 0.0
        %1357 = vmatprep.subr.mxu0 0.0
        %1358 = vmatpush2.msra.mxu0 0.0
        %1359 = vmatprep.subr.mxu0 0.0
        %1360 = vmatpush2.msra.mxu0 0.0
        %1361 = vmatprep.mubr.f32.mxu0 0.0
        %1362 = vmatmul.mubr.f32.gmra.mxu0 %v1295
        %v1363 = vpop.f32.mrf.mxu0
        %v1364 = vadd.f32 0.0, %v1363
        %v1365 = vpop.f32.mrf.mxu0
        %v1366 = vadd.f32 0.0, %v1365
        %1367 = vdwg.mxu0
        %v1368 = vadd.f32 %v731, %v1364
        %v1369 = vadd.f32 %v733, %v1366
        %v1370 = vxor.u32 %v1368, 2147483648
        %v1371 = vxor.u32 %v1369, 2147483648
        %v1372 = vmul.f32 %v1370, 1.442695
        %v1373 = vpow.pop %v1372
        %v1374 = vmul.f32 %v1371, 1.442695
        %v1375 = vpow.pop %v1374
        %v1376 = vadd.f32 %v1373, 1.0
        %v1377 = vadd.f32 %v1375, 1.0
        %v1378 = vrcp.pop %v1376
        %v1379 = vmul.f32 1.0, %v1378
        %v1380 = vrcp.pop %v1377
        %v1381 = vmul.f32 1.0, %v1380
        %v1382 = vtanh.pop %v1369
        %1384 = vrot.lane.b32.xlu0 %v591, 64
        %v1385 = vpop.permute.xlu0 %1384
        %v1387 = vmul.f32 %v1379, %v1385
        %1389 = vrot.lane.b32.xlu0 %v1382, 64
        %v1390 = vpop.permute.xlu0 %1389
        %v1392 = vmul.f32 %v1379, %v1390
        %1394 = vrot.lane.b32.xlu0 %v1392, 64
        %v1395 = vpop.permute.xlu0 %1394
        %v1397 = vadd.f32 %v1387, %v1395
        %v1398 = vtanh.pop %v1397
        %1400 = vrot.lane.b32.xlu0 %v1398, 64
        %v1401 = vpop.permute.xlu0 %1400
        %v1403 = vmul.f32 %v1381, %v1401
        %vm1404 = vcmask 519168
        %1405 = vst.msk [vmem:[#allocation2] sm:$0xf] %vm1404, %v1403
        %1407 = vrot.lane.b32.xlu0 %v1397, 64
        %v1408 = vpop.permute.xlu0 %1407
        %1411 = vrot.lane.b32.xlu0 %v1403, 64
        %v1412 = vpop.permute.xlu0 %1411
        %v1414 = vsel %vm597, %v1408, %v1412
        %1415 = vst [vmem:[%s535] sm:$0xf] %v1414
        %s1416 = sand.u32 %s353, 1
        %s1417 = scalar_lea.sflag [#allocation4], %s1416
        %s1418 = sand.u32 %s353, 1
        %s1419 = smul.addr %s1418, 4
        %s1420 = scalar_lea.vmem [#allocation3], %s1419
        // Predicated region
        $region77: #{tpu_custom_call.1} parent=71 // pred_check
          %p1421 = pneg %p363
        $region78: #{tpu_custom_call.1} parent=71 // pred_check_branch
          %1423 = sbr.rel (%p1421) target = $region80
        $region79: #{tpu_custom_call.1} parent=71 // pred_region
          %s1425 = ssub.s32 64, 64
          %1426 = vsyncadd %s1417, %s1425
          %s1427 = smul.addr %s27, 64
          %s1428 = scalar_lea.hbm %s13, %s1427
          %s1430 = sshll.u32 %s1420, 4
          %s1431 = int_to_ptr.vmem [resolvable:$true] %s1430
          %1433 = dma.vmem_to_hbm [thread:$0]  %s1431, 64, %s1428, %s1417
        $region80: #{tpu_custom_call.1} parent=71 // pred_fallthru
          _
      $region72: #{tpu_custom_call.1} parent=5 // pred_fallthru
        _
      %p1434 = scmp.le.s32.totalorder 2, %s22
      // Predicated region
      $region81: #{tpu_custom_call.1} parent=5 // pred_check
        %p1435 = pneg %p1434
      $region82: #{tpu_custom_call.1} parent=5 // pred_check_branch
        %1437 = sbr.rel (%p1435) target = $region84
      $region83: #{tpu_custom_call.1} parent=5 // pred_region
        %s1438 = ssub.s32 %s22, 2
        // Predicated region
        $region85: #{tpu_custom_call.1} parent=83 // pred_check
          %p1439 = pneg %p369
        $region86: #{tpu_custom_call.1} parent=83 // pred_check_branch
          %1441 = sbr.rel (%p1439) target = $region88
        $region87: #{tpu_custom_call.1} parent=83 // pred_region
          %s1442 = sand.u32 %s354, 1
          %s1443 = scalar_lea.sflag [#allocation4], %s1442
          %s1444 = sand.u32 %s354, 1
          %s1445 = smul.addr %s1444, 4
          %s1446 = scalar_lea.vmem [#allocation3], %s1445
          %1447 = dma.done %s1443, 64
        $region88: #{tpu_custom_call.1} parent=83 // pred_fallthru
          _
      $region84: #{tpu_custom_call.1} parent=5 // pred_fallthru
        _
    $region6: #{tpu_custom_call.1} parent=1 // loop_footer
      %s26 = sadd.s32 1, %s22
    $region7: #{tpu_custom_call.1} parent=1 // loop_footer_branch
      %21 = sbr.rel target = $region3
    $region8: #{tpu_custom_call.1} parent=1 // loop_exit
      _
    %1448 = vsyncpa [#allocation4], 1
    %s1449 = scalar_lea.sflag [#allocation4], 1
    %1450 = vsyncpa %s1449, 1

</llo_original>
